<compile_context>
chip_gen: v7x
topology: tpu7x:2x2x1
jax: 0.10.0
libtpu: 0.0.40
codegen_flags: <defaults>
</compile_context>

<pallas_src>
import functools

import jax
import jax.numpy as jnp
from jax import lax
from jax.experimental import pallas as pl
from jax.experimental.pallas import tpu as pltpu

BN_EPS = 1e-5


# ----------------------------- Pallas kernels ------------------------------ #

def _fused_s1_kernel(x_ref, w1_ref, b1_ref, kdw_ref, sdw_ref, w2f_ref, b2f_ref, pe_ref,
                     o_ref, ypad_ref, *, H, W, bf, off):
    """Whole stride-1 ShuffleV2 block for one image.

    Layout: channels in sublanes, flattened H*W in lanes (plain NCHW rows), so every
    elementwise / depthwise op and every store is lane-dense.
    x -> [x1 | x2]; b2 = SiLU(BN(1x1(x2))) -> BN(dw5x5) -> SiLU(BN(1x1))
    out = channel_shuffle(concat([x1, b2]), groups=2)  (shuffle folded into the weights).
    """
    f32 = jnp.float32
    HW = H * W

    # zero only the halo of the flat padded scratch (interior fully overwritten below)
    ypad_ref[:, :off] = jnp.zeros((bf, off), f32)
    ypad_ref[:, off + HW:] = jnp.zeros((bf, off), f32)

    x = x_ref[...].astype(f32)                       # (2*bf, HW)
    x1 = x[:bf, :]                                   # passthrough half
    x2 = x[bf:, :]                                   # branch-2 half (channel split = free slice)

    # -- 1x1 conv #1 + BN + SiLU (one MXU matmul over all H*W columns) --
    z1 = jnp.dot(w1_ref[...], x2, preferred_element_type=f32) + b1_ref[...]
    y1 = z1 * jax.nn.sigmoid(z1)                     # (bf, HW)

    # flat (row-stride W) padded copy of y1: H padding is real zeros in the halo,
    # W-boundary handled with a single lane mask per kw group below.
    ypad_ref[:, pl.ds(off, HW)] = y1

    # -- 5x5 depthwise conv + BN, stride 1, fully lane-dense --
    wpos = lax.broadcasted_iota(jnp.int32, (bf, HW), 1) % W
    acc = jnp.zeros((bf, HW), f32)
    for kw in range(5):
        d = kw - 2
        part = jnp.zeros((bf, HW), f32)
        for kh in range(5):
            t = kh * 5 + kw
            tap = ypad_ref[:, pl.ds(off + (kh - 2) * W + d, HW)]
            part = part + tap * kdw_ref[:, t:t + 1]
        if d != 0:                                   # 4 masks/image total (was 20)
            part = jnp.where((wpos + d >= 0) & (wpos + d < W), part, 0.0)
        acc = acc + part
    y2 = acc + sdw_ref[...]                          # (bf, HW)

    # -- 1x1 conv #2 + BN + SiLU (channel shuffle folded -> odd output rows; silu(0)=0 on
    #    the zeroed even rows) + exact 0/1-matmul scatter of x1 onto the even rows --
    z2 = jnp.dot(w2f_ref[...], y2, preferred_element_type=f32) + b2f_ref[...]
    out = z2 * jax.nn.sigmoid(z2) + jnp.dot(pe_ref[...], x1, preferred_element_type=f32)
    o_ref[...] = out.astype(o_ref.dtype)


def _fused_s2_kernel(x_ref, w21_ref, b21_ref, cp_ref, sdw_ref, wf_ref, bfin_ref,
                     o_ref, spad_ref, *, C, bf, Ho, Wo, off):
    """Whole stride-2 ShuffleV2 block for one image, polyphase form.

    x_ref holds the 4 (h,w)-parity phases of the input packed along lanes:
      lane = (2*ph + pw) * Ho*Wo + oh*Wo + ow .
    branch1 = BN(dw5x5_s2(x)) -> SiLU(BN(1x1))                      (-> even out rows)
    branch2 = SiLU(BN(1x1(x))) -> BN(dw5x5_s2) -> SiLU(BN(1x1))     (-> odd  out rows)
    """
    f32 = jnp.float32
    HWo = Ho * Wo
    P = 4 * HWo
    CS = C + bf

    spad_ref[:, :off] = jnp.zeros((CS, off), f32)
    spad_ref[:, off + P:] = jnp.zeros((CS, off), f32)

    x = x_ref[...].astype(f32)                       # (C, 4*Ho*Wo)

    # -- branch-2 stage 1: 1x1 conv + BN + SiLU over all 4 phases at once --
    z1 = jnp.dot(w21_ref[...], x, preferred_element_type=f32) + b21_ref[...]
    y1 = z1 * jax.nn.sigmoid(z1)                     # (bf, P)

    # stack [x ; y1] in one padded scratch so both depthwise convs share one tap loop
    spad_ref[:C, pl.ds(off, P)] = x
    spad_ref[C:, pl.ds(off, P)] = y1

    # -- both 5x5 stride-2 depthwise convs as 9 polyphase taps; coefficient planes carry
    #    the kernel taps, BN scales and the zero-padding masks (all precomputed) --
    acc = jnp.zeros((CS, P), f32)
    t = 0
    for dy in (-1, 0, 1):
        for dx in (-1, 0, 1):
            tap = spad_ref[:, pl.ds(off + dy * Wo + dx, P)]
            acc = acc + tap * cp_ref[t]
            t += 1
    # reduce the 4 phases and add the folded BN shifts
    u = (acc[:, 0:HWo] + acc[:, HWo:2 * HWo] + acc[:, 2 * HWo:3 * HWo]
         + acc[:, 3 * HWo:4 * HWo] + sdw_ref[...])   # (C+bf, Ho*Wo)

    # -- both final 1x1 convs + BN + SiLU + channel shuffle fused in ONE matmul:
    #    block-diagonal weight routes branch1 -> even rows, branch2 -> odd rows --
    z = jnp.dot(wf_ref[...], u, preferred_element_type=f32) + bfin_ref[...]
    o_ref[...] = (z * jax.nn.sigmoid(z)).astype(o_ref.dtype)


# --------------------------- weight folding helpers -------------------------- #

def _fold_bn(bn):
    rstd = 1.0 / jnp.sqrt(bn["var"] + BN_EPS)
    scale = bn["gamma"] * rstd
    shift = bn["beta"] - bn["mean"] * scale
    return scale, shift


def _fold_pw(w, bn):
    """PyTorch 1x1 conv weight (Cout, Cin) + BN -> left-multiply matrix (Cout, Cin) and
    column bias (Cout, 1) for the channels-in-sublanes layout."""
    scale, shift = _fold_bn(bn)
    return (w * scale[:, None]).astype(jnp.float32), shift.reshape(-1, 1).astype(jnp.float32)


def _fold_dw_taps(k, bn):
    """Depthwise (5,5,C) kernel + BN -> (C, 25) per-channel taps and (C, 1) shift."""
    scale, shift = _fold_bn(bn)
    kf = (k * scale[None, None, :]).reshape(25, -1).T
    return kf.astype(jnp.float32), shift.reshape(-1, 1).astype(jnp.float32)


def _fold_dw_5x5(k, bn):
    """Depthwise (5,5,C) kernel + BN -> BN-scaled (5,5,C) kernel and (C, 1) shift."""
    scale, shift = _fold_bn(bn)
    return (k * scale[None, None, :]).astype(jnp.float32), shift.reshape(-1, 1).astype(jnp.float32)


def _phase_coef_planes(kf, Ho, Wo):
    """BN-scaled 5x5 stride-2 depthwise kernel (5,5,Cc) -> 9 polyphase coefficient planes
    (9, Cc, 4*Ho*Wo) with the zero-padding validity masks folded in."""
    Cc = kf.shape[-1]
    oh = jnp.arange(Ho)[:, None]
    ow = jnp.arange(Wo)[None, :]
    planes = []
    for dy in (-1, 0, 1):
        for dx in (-1, 0, 1):
            valid = ((oh + dy >= 0) & (oh + dy < Ho) &
                     (ow + dx >= 0) & (ow + dx < Wo)).astype(jnp.float32)    # (Ho, Wo)
            per_phase = []
            for ph in (0, 1):
                for pw in (0, 1):
                    kh, kw = 2 * (dy + 1) + ph, 2 * (dx + 1) + pw
                    if kh <= 4 and kw <= 4:
                        kval = kf[kh, kw]                                    # (Cc,)
                    else:
                        kval = jnp.zeros((Cc,), jnp.float32)
                    per_phase.append(kval[:, None, None] * valid[None, :, :])
            planes.append(jnp.stack(per_phase, axis=1).reshape(Cc, 4 * Ho * Wo))
    return jnp.stack(planes, axis=0)                                          # (9, Cc, 4*Ho*Wo)


def _round_up(v, m):
    return -(-v // m) * m


# ------------------------------ Block forward ------------------------------ #

@functools.partial(jax.jit, static_argnames=("stride",))
def shufflev2_block(x_nchw, params, stride):
    """Forward of ShuffleV2Block. Input/output NCHW (PyTorch convention)."""
    N, C, H, W = x_nchw.shape
    p2 = params["b2"]
    bf = p2["w1"].shape[0]
    Cout = 2 * bf
    HW = H * W
    dtype = x_nchw.dtype
    cparams = pltpu.CompilerParams(dimension_semantics=("parallel",),
                                   vmem_limit_bytes=32 * 1024 * 1024)

    if stride == 1:
        x_flat = x_nchw.reshape(N, C, HW)                       # metadata-only reshape
        w1, b1 = _fold_pw(p2["w1"], p2["bn1"])                  # (bf, bf), (bf, 1)
        kdw, sdw = _fold_dw_taps(p2["kdw"], p2["bndw"])         # (bf, 25), (bf, 1)
        w2, b2 = _fold_pw(p2["w2"], p2["bn2"])
        w2f = jnp.zeros((Cout, bf), jnp.float32).at[1::2, :].set(w2)   # shuffle -> odd rows
        b2f = jnp.zeros((Cout, 1), jnp.float32).at[1::2, :].set(b2)
        pe = jnp.zeros((Cout, bf), jnp.float32).at[0::2, :].set(
            jnp.eye(bf, dtype=jnp.float32))                            # x1 -> even rows

        off = _round_up(2 * W + 2, 128)                  # aligned store / halo >= 2W+2
        padlen = off + HW + off

        kern = functools.partial(_fused_s1_kernel, H=H, W=W, bf=bf, off=off)
        out = pl.pallas_call(
            kern,
            out_shape=jax.ShapeDtypeStruct((N, Cout, HW), dtype),
            grid_spec=pltpu.PrefetchScalarGridSpec(
                num_scalar_prefetch=0,
                grid=(N,),
                in_specs=[
                    pl.BlockSpec((None, C, HW), lambda n: (n, 0, 0)),
                    pl.BlockSpec(w1.shape, lambda n: (0, 0)),
                    pl.BlockSpec(b1.shape, lambda n: (0, 0)),
                    pl.BlockSpec(kdw.shape, lambda n: (0, 0)),
                    pl.BlockSpec(sdw.shape, lambda n: (0, 0)),
                    pl.BlockSpec(w2f.shape, lambda n: (0, 0)),
                    pl.BlockSpec(b2f.shape, lambda n: (0, 0)),
                    pl.BlockSpec(pe.shape, lambda n: (0, 0)),
                ],
                out_specs=pl.BlockSpec((None, Cout, HW), lambda n: (n, 0, 0)),
                scratch_shapes=[pltpu.VMEM((bf, padlen), jnp.float32)],
            ),
            compiler_params=cparams,
        )(x_flat, w1, b1, kdw, sdw, w2f, b2f, pe)
        return out.reshape(N, Cout, H, W)

    # ----------------------------- stride == 2 ----------------------------- #
    assert H % 2 == 0 and W % 2 == 0, "stride-2 path assumes even spatial dims"
    Ho, Wo = H // 2, W // 2
    P = 4 * Ho * Wo
    # single input tensor: polyphase (phase-major) layout, one XLA relayout pass
    x_ph = (x_nchw.reshape(N, C, Ho, 2, Wo, 2)
            .transpose(0, 1, 3, 5, 2, 4)
            .reshape(N, C, P))

    p1 = params["b1"]
    w21, b21 = _fold_pw(p2["w1"], p2["bn1"])                      # (bf, C), (bf, 1)
    k1, sd1 = _fold_dw_5x5(p1["kdw"], p1["bndw"])                 # (5,5,C), (C,1)
    k2, sd2 = _fold_dw_5x5(p2["kdw"], p2["bndw"])                 # (5,5,bf), (bf,1)
    cp = jnp.concatenate([_phase_coef_planes(k1, Ho, Wo),
                          _phase_coef_planes(k2, Ho, Wo)], axis=1)  # (9, C+bf, P)
    sdw = jnp.concatenate([sd1, sd2], axis=0)                       # (C+bf, 1)
    w1b, b1b = _fold_pw(p1["w"], p1["bn"])                          # branch1 final 1x1
    w22, b22 = _fold_pw(p2["w2"], p2["bn2"])                        # branch2 final 1x1
    wf = (jnp.zeros((Cout, C + bf), jnp.float32)
          .at[0::2, :C].set(w1b).at[1::2, C:].set(w22))             # shuffle folded
    bff = (jnp.zeros((Cout, 1), jnp.float32)
           .at[0::2, :].set(b1b).at[1::2, :].set(b22))

    off = _round_up(Wo + 1, 128)
    padlen = off + P + off

    kern = functools.partial(_fused_s2_kernel, C=C, bf=bf, Ho=Ho, Wo=Wo, off=off)
    out = pl.pallas_call(
        kern,
        out_shape=jax.ShapeDtypeStruct((N, Cout, Ho * Wo), dtype),
        grid_spec=pltpu.PrefetchScalarGridSpec(
            num_scalar_prefetch=0,
            grid=(N,),
            in_specs=[
                pl.BlockSpec((None, C, P), lambda n: (n, 0, 0)),
                pl.BlockSpec(w21.shape, lambda n: (0, 0)),
                pl.BlockSpec(b21.shape, lambda n: (0, 0)),
                pl.BlockSpec(cp.shape, lambda n: (0, 0, 0)),
                pl.BlockSpec(sdw.shape, lambda n: (0, 0)),
                pl.BlockSpec(wf.shape, lambda n: (0, 0)),
                pl.BlockSpec(bff.shape, lambda n: (0, 0)),
            ],
            out_specs=pl.BlockSpec((None, Cout, Ho * Wo), lambda n: (n, 0, 0)),
            scratch_shapes=[pltpu.VMEM((C + bf, padlen), jnp.float32)],
        ),
        compiler_params=cparams,
    )(x_ph, w21, b21, cp, sdw, wf, bff)
    return out.reshape(N, Cout, Ho, Wo)


# --------------------------- Deterministic params --------------------------- #

def init_params(key, inp, oup, stride):
    bf = oup // 2
    assert stride != 1 or inp == bf * 2
    keys = iter(jax.random.split(key, 64))

    def conv1x1(cin, cout):
        return 0.2 * jax.random.normal(next(keys), (cout, cin), jnp.float32)

    def dw5(c):
        return 0.2 * jax.random.normal(next(keys), (5, 5, c), jnp.float32)

    def bn(c):
        return dict(
            gamma=1.0 + 0.1 * jax.random.normal(next(keys), (c,), jnp.float32),
            beta=0.1 * jax.random.normal(next(keys), (c,), jnp.float32),
            mean=0.1 * jax.random.normal(next(keys), (c,), jnp.float32),
            var=1.0 + 0.1 * jax.random.uniform(next(keys), (c,), jnp.float32),
        )

    c2_in = inp if stride > 1 else bf
    params = {
        "b2": dict(w1=conv1x1(c2_in, bf), bn1=bn(bf),
                   kdw=dw5(bf), bndw=bn(bf),
                   w2=conv1x1(bf, bf), bn2=bn(bf))
    }
    if stride > 1:
        params["b1"] = dict(kdw=dw5(inp), bndw=bn(inp),
                            w=conv1x1(inp, bf), bn=bn(bf))
    return params


# ------------------------------ Pure-JAX reference -------------------------- #

def ref_block(x, params, stride):
    def bn_apply(z, bn):
        scale = bn["gamma"] / jnp.sqrt(bn["var"] + BN_EPS)
        shift = bn["beta"] - bn["mean"] * scale
        return z * scale[None, :, None, None] + shift[None, :, None, None]

    def conv1x1(z, w):
        return lax.conv_general_dilated(z, w[:, :, None, None], (1, 1), "VALID",
                                        dimension_numbers=("NCHW", "OIHW", "NCHW"))

    def dwconv(z, k):
        c = z.shape[1]
        kk = jnp.transpose(k, (2, 0, 1))[:, None, :, :]
        return lax.conv_general_dilated(z, kk, (stride, stride), ((2, 2), (2, 2)),
                                        dimension_numbers=("NCHW", "OIHW", "NCHW"),
                                        feature_group_count=c)

    def silu(z):
        return z * jax.nn.sigmoid(z)

    def br2(z, p):
        y = silu(bn_apply(conv1x1(z, p["w1"]), p["bn1"]))
        y = bn_apply(dwconv(y, p["kdw"]), p["bndw"])
        return silu(bn_apply(conv1x1(y, p["w2"]), p["bn2"]))

    if stride == 1:
        c = x.shape[1]
        x1, x2 = x[:, : c // 2], x[:, c // 2:]
        out = jnp.concatenate([x1, br2(x2, params["b2"])], axis=1)
    else:
        p1 = params["b1"]
        b1 = silu(bn_apply(conv1x1(bn_apply(dwconv(x, p1["kdw"]), p1["bndw"]), p1["w"]), p1["bn"]))
        out = jnp.concatenate([b1, br2(x, params["b2"])], axis=1)

    N, C, H, W = out.shape
    out = out.reshape(N, 2, C // 2, H, W).transpose(0, 2, 1, 3, 4).reshape(N, C, H, W)
    return out


# ----------------------------------- main ----------------------------------- #

if __name__ == "__main__":
    import numpy as np

    key = jax.random.PRNGKey(0)
    k_x1, k_p1, k_x2, k_p2 = jax.random.split(key, 4)

    # Case 1: stride=1, inp == oup == 32 (requires inp == 2 * branch_features)
    inp1, oup1, stride1 = 32, 32, 1
    x1 = jax.random.normal(k_x1, (2, inp1, 16, 16), jnp.float32)
    p1 = init_params(k_p1, inp1, oup1, stride1)
    out1 = jax.block_until_ready(shufflev2_block(x1, p1, stride1))
    ref1 = jax.block_until_ready(ref_block(x1, p1, stride1))
    assert out1.shape == (2, oup1, 16, 16)
    np.testing.assert_allclose(np.asarray(out1), np.asarray(ref1), rtol=1e-4, atol=1e-4)

    # Case 2: stride=2, inp=16 -> oup=32 (spatial downsample, branch1 active)
    inp2, oup2, stride2 = 16, 32, 2
    x2 = jax.random.normal(k_x2, (2, inp2, 16, 16), jnp.float32)
    p2 = init_params(k_p2, inp2, oup2, stride2)
    out2 = jax.block_until_ready(shufflev2_block(x2, p2, stride2))
    ref2 = jax.block_until_ready(ref_block(x2, p2, stride2))
    assert out2.shape == (2, oup2, 8, 8)
    np.testing.assert_allclose(np.asarray(out2), np.asarray(ref2), rtol=1e-4, atol=1e-4)

    print("KERNEL_OK")
</pallas_src>

<mosaic_0001>
module attributes {stable_mosaic.version = 11 : i64} {
  func.func @_fused_s1_kernel(%arg0: i32, %arg1: memref<1x32x256xf32, #tpu.memory_space<vmem>>, %arg2: memref<16x16xf32, #tpu.memory_space<vmem>>, %arg3: memref<16x1xf32, #tpu.memory_space<vmem>>, %arg4: memref<16x25xf32, #tpu.memory_space<vmem>>, %arg5: memref<16x1xf32, #tpu.memory_space<vmem>>, %arg6: memref<32x16xf32, #tpu.memory_space<vmem>>, %arg7: memref<32x1xf32, #tpu.memory_space<vmem>>, %arg8: memref<32x16xf32, #tpu.memory_space<vmem>>, %arg9: memref<1x32x256xf32, #tpu.memory_space<vmem>>, %arg10: memref<16x512xf32, #tpu.memory_space<vmem>>) attributes {dimension_semantics = [#tpu.dimension_semantics<parallel>], iteration_bounds = array<i64: 2>, scalar_prefetch = 0 : i64, scratch_operands = 1 : i64, tpu.core_type = #tpu.core_type<tc>, window_params = [{transform_indices = @transform_0, window_bounds = array<i64: 1, 32, 256>}, {pipeline_mode = #tpu.pipeline_mode<synchronous>, transform_indices = @transform_1, window_bounds = array<i64: 16, 16>}, {pipeline_mode = #tpu.pipeline_mode<synchronous>, transform_indices = @transform_2, window_bounds = array<i64: 16, 1>}, {pipeline_mode = #tpu.pipeline_mode<synchronous>, transform_indices = @transform_3, window_bounds = array<i64: 16, 25>}, {pipeline_mode = #tpu.pipeline_mode<synchronous>, transform_indices = @transform_4, window_bounds = array<i64: 16, 1>}, {pipeline_mode = #tpu.pipeline_mode<synchronous>, transform_indices = @transform_5, window_bounds = array<i64: 32, 16>}, {pipeline_mode = #tpu.pipeline_mode<synchronous>, transform_indices = @transform_6, window_bounds = array<i64: 32, 1>}, {pipeline_mode = #tpu.pipeline_mode<synchronous>, transform_indices = @transform_7, window_bounds = array<i64: 32, 16>}, {transform_indices = @transform_8, window_bounds = array<i64: 1, 32, 256>}]} {
    %cst = arith.constant 0.000000e+00 : f32
    %0 = vector.broadcast %cst : f32 to vector<16x128xf32>
    %c0 = arith.constant 0 : index
    %c0_0 = arith.constant 0 : index
    %1 = vector.load %arg10[%c0, %c0_0] : memref<16x512xf32, #tpu.memory_space<vmem>>, vector<16x128xf32>
    tpu.vector_store %arg10[%c0, %c0_0], %0 {strides = array<i32>} : memref<16x512xf32, #tpu.memory_space<vmem>>, vector<16x128xf32>,
    %cst_1 = arith.constant 0.000000e+00 : f32
    %2 = vector.broadcast %cst_1 : f32 to vector<16x128xf32>
    %c0_2 = arith.constant 0 : index
    %c384 = arith.constant 384 : index
    %3 = vector.load %arg10[%c0_2, %c384] : memref<16x512xf32, #tpu.memory_space<vmem>>, vector<16x128xf32>
    tpu.vector_store %arg10[%c0_2, %c384], %2 {strides = array<i32>} : memref<16x512xf32, #tpu.memory_space<vmem>>, vector<16x128xf32>,
    %c0_3 = arith.constant 0 : index
    %c0_4 = arith.constant 0 : index
    %c0_5 = arith.constant 0 : index
    %4 = vector.load %arg1[%c0_3, %c0_4, %c0_5] : memref<1x32x256xf32, #tpu.memory_space<vmem>>, vector<1x32x256xf32>
    %5 = vector.shape_cast %4 : vector<1x32x256xf32> to vector<32x256xf32>
    %6 = vector.extract_strided_slice %5 {offsets = [0, 0], sizes = [16, 256], strides = [1, 1]} : vector<32x256xf32> to vector<16x256xf32>
    %7 = vector.extract_strided_slice %5 {offsets = [16, 0], sizes = [16, 256], strides = [1, 1]} : vector<32x256xf32> to vector<16x256xf32>
    %c0_6 = arith.constant 0 : index
    %c0_7 = arith.constant 0 : index
    %8 = vector.load %arg2[%c0_6, %c0_7] : memref<16x16xf32, #tpu.memory_space<vmem>>, vector<16x16xf32>
    %cst_8 = arith.constant dense<0.000000e+00> : vector<16x256xf32>
    %9 = tpu.matmul %8, %7, %cst_8 {dimension_numbers = #tpu.dot_dimension_numbers<[1], [0], [0], [1], [0, 0, 1, 1], [], []>} : vector<16x16xf32>, vector<16x256xf32>, vector<16x256xf32> -> vector<16x256xf32>
    %c0_9 = arith.constant 0 : index
    %c0_10 = arith.constant 0 : index
    %10 = vector.load %arg3[%c0_9, %c0_10] : memref<16x1xf32, #tpu.memory_space<vmem>>, vector<16x1xf32>
    %11 = vector.broadcast %10 : vector<16x1xf32> to vector<16x256xf32>
    %12 = arith.addf %9, %11 : vector<16x256xf32>
    %13 = arith.negf %12 : vector<16x256xf32>
    %14 = math.exp %13 : vector<16x256xf32>
    %cst_11 = arith.constant 1.000000e+00 : f32
    %15 = vector.broadcast %cst_11 : f32 to vector<16x256xf32>
    %16 = arith.addf %15, %14 : vector<16x256xf32>
    %17 = arith.divf %15, %16 : vector<16x256xf32>
    %18 = arith.mulf %12, %17 : vector<16x256xf32>
    %c0_12 = arith.constant 0 : index
    %c128 = arith.constant 128 : index
    %19 = vector.load %arg10[%c0_12, %c128] : memref<16x512xf32, #tpu.memory_space<vmem>>, vector<16x256xf32>
    tpu.vector_store %arg10[%c0_12, %c128], %18 {strides = array<i32>} : memref<16x512xf32, #tpu.memory_space<vmem>>, vector<16x256xf32>,
    %20 = tpu.iota {dimensions = array<i32: 1>} : vector<16x256xi32>
    %c16_i32 = arith.constant 16 : i32
    %c0_i32 = arith.constant 0 : i32
    %21 = arith.cmpi eq, %c16_i32, %c0_i32 : i32
    %c1_i32 = arith.constant 1 : i32
    %22 = arith.select %21, %c1_i32, %c16_i32 : i32
    %23 = vector.broadcast %22 : i32 to vector<16x256xi32>
    %24 = arith.remsi %20, %23 : vector<16x256xi32>
    %c0_i32_13 = arith.constant 0 : i32
    %25 = vector.broadcast %c0_i32_13 : i32 to vector<16x256xi32>
    %26 = arith.cmpi ne, %24, %25 : vector<16x256xi32>
    %c0_i32_14 = arith.constant 0 : i32
    %27 = vector.broadcast %c0_i32_14 : i32 to vector<16x256xi32>
    %28 = arith.cmpi slt, %24, %27 : vector<16x256xi32>
    %c0_i32_15 = arith.constant 0 : i32
    %29 = arith.cmpi slt, %22, %c0_i32_15 : i32
    %30 = vector.broadcast %29 : i1 to vector<16x256xi1>
    %31 = vector.broadcast %30 : vector<16x256xi1> to vector<16x256xi1>
    %32 = arith.xori %28, %31 : vector<16x256xi1>
    %33 = arith.andi %32, %26 : vector<16x256xi1>
    %34 = vector.broadcast %22 : i32 to vector<16x256xi32>
    %35 = arith.addi %24, %34 : vector<16x256xi32>
    %36 = arith.select %33, %35, %24 : vector<16x256xi1>, vector<16x256xi32>
    %cst_16 = arith.constant 0.000000e+00 : f32
    %37 = vector.broadcast %cst_16 : f32 to vector<16x256xf32>
    %cst_17 = arith.constant 0.000000e+00 : f32
    %38 = vector.broadcast %cst_17 : f32 to vector<16x256xf32>
    %c0_18 = arith.constant 0 : index
    %c94 = arith.constant 94 : index
    %39 = vector.load %arg10[%c0_18, %c94] : memref<16x512xf32, #tpu.memory_space<vmem>>, vector<16x256xf32>
    %c0_19 = arith.constant 0 : index
    %c0_20 = arith.constant 0 : index
    %40 = vector.load %arg4[%c0_19, %c0_20] : memref<16x25xf32, #tpu.memory_space<vmem>>, vector<16x1xf32>
    %41 = vector.broadcast %40 : vector<16x1xf32> to vector<16x256xf32>
    %42 = arith.mulf %39, %41 : vector<16x256xf32>
    %43 = arith.addf %38, %42 : vector<16x256xf32>
    %c0_21 = arith.constant 0 : index
    %c110 = arith.constant 110 : index
    %44 = vector.load %arg10[%c0_21, %c110] : memref<16x512xf32, #tpu.memory_space<vmem>>, vector<16x256xf32>
    %c0_22 = arith.constant 0 : index
    %c5 = arith.constant 5 : index
    %45 = vector.load %arg4[%c0_22, %c5] : memref<16x25xf32, #tpu.memory_space<vmem>>, vector<16x1xf32>
    %46 = vector.broadcast %45 : vector<16x1xf32> to vector<16x256xf32>
    %47 = arith.mulf %44, %46 : vector<16x256xf32>
    %48 = arith.addf %43, %47 : vector<16x256xf32>
    %c0_23 = arith.constant 0 : index
    %c126 = arith.constant 126 : index
    %49 = vector.load %arg10[%c0_23, %c126] : memref<16x512xf32, #tpu.memory_space<vmem>>, vector<16x256xf32>
    %c0_24 = arith.constant 0 : index
    %c10 = arith.constant 10 : index
    %50 = vector.load %arg4[%c0_24, %c10] : memref<16x25xf32, #tpu.memory_space<vmem>>, vector<16x1xf32>
    %51 = vector.broadcast %50 : vector<16x1xf32> to vector<16x256xf32>
    %52 = arith.mulf %49, %51 : vector<16x256xf32>
    %53 = arith.addf %48, %52 : vector<16x256xf32>
    %c0_25 = arith.constant 0 : index
    %c142 = arith.constant 142 : index
    %54 = vector.load %arg10[%c0_25, %c142] : memref<16x512xf32, #tpu.memory_space<vmem>>, vector<16x256xf32>
    %c0_26 = arith.constant 0 : index
    %c15 = arith.constant 15 : index
    %55 = vector.load %arg4[%c0_26, %c15] : memref<16x25xf32, #tpu.memory_space<vmem>>, vector<16x1xf32>
    %56 = vector.broadcast %55 : vector<16x1xf32> to vector<16x256xf32>
    %57 = arith.mulf %54, %56 : vector<16x256xf32>
    %58 = arith.addf %53, %57 : vector<16x256xf32>
    %c0_27 = arith.constant 0 : index
    %c158 = arith.constant 158 : index
    %59 = vector.load %arg10[%c0_27, %c158] : memref<16x512xf32, #tpu.memory_space<vmem>>, vector<16x256xf32>
    %c0_28 = arith.constant 0 : index
    %c20 = arith.constant 20 : index
    %60 = vector.load %arg4[%c0_28, %c20] : memref<16x25xf32, #tpu.memory_space<vmem>>, vector<16x1xf32>
    %61 = vector.broadcast %60 : vector<16x1xf32> to vector<16x256xf32>
    %62 = arith.mulf %59, %61 : vector<16x256xf32>
    %63 = arith.addf %58, %62 : vector<16x256xf32>
    %c-2_i32 = arith.constant -2 : i32
    %64 = vector.broadcast %c-2_i32 : i32 to vector<16x256xi32>
    %65 = arith.addi %36, %64 : vector<16x256xi32>
    %c0_i32_29 = arith.constant 0 : i32
    %66 = vector.broadcast %c0_i32_29 : i32 to vector<16x256xi32>
    %67 = arith.cmpi sge, %65, %66 : vector<16x256xi32>
    %c-2_i32_30 = arith.constant -2 : i32
    %68 = vector.broadcast %c-2_i32_30 : i32 to vector<16x256xi32>
    %69 = arith.addi %36, %68 : vector<16x256xi32>
    %c16_i32_31 = arith.constant 16 : i32
    %70 = vector.broadcast %c16_i32_31 : i32 to vector<16x256xi32>
    %71 = arith.cmpi slt, %69, %70 : vector<16x256xi32>
    %72 = arith.andi %67, %71 : vector<16x256xi1>
    %cst_32 = arith.constant 0.000000e+00 : f32
    %73 = vector.broadcast %cst_32 : f32 to vector<16x256xf32>
    %74 = arith.select %72, %63, %73 : vector<16x256xi1>, vector<16x256xf32>
    %75 = arith.addf %37, %74 : vector<16x256xf32>
    %cst_33 = arith.constant 0.000000e+00 : f32
    %76 = vector.broadcast %cst_33 : f32 to vector<16x256xf32>
    %c0_34 = arith.constant 0 : index
    %c95 = arith.constant 95 : index
    %77 = vector.load %arg10[%c0_34, %c95] : memref<16x512xf32, #tpu.memory_space<vmem>>, vector<16x256xf32>
    %c0_35 = arith.constant 0 : index
    %c1 = arith.constant 1 : index
    %78 = vector.load %arg4[%c0_35, %c1] : memref<16x25xf32, #tpu.memory_space<vmem>>, vector<16x1xf32>
    %79 = vector.broadcast %78 : vector<16x1xf32> to vector<16x256xf32>
    %80 = arith.mulf %77, %79 : vector<16x256xf32>
    %81 = arith.addf %76, %80 : vector<16x256xf32>
    %c0_36 = arith.constant 0 : index
    %c111 = arith.constant 111 : index
    %82 = vector.load %arg10[%c0_36, %c111] : memref<16x512xf32, #tpu.memory_space<vmem>>, vector<16x256xf32>
    %c0_37 = arith.constant 0 : index
    %c6 = arith.constant 6 : index
    %83 = vector.load %arg4[%c0_37, %c6] : memref<16x25xf32, #tpu.memory_space<vmem>>, vector<16x1xf32>
    %84 = vector.broadcast %83 : vector<16x1xf32> to vector<16x256xf32>
    %85 = arith.mulf %82, %84 : vector<16x256xf32>
    %86 = arith.addf %81, %85 : vector<16x256xf32>
    %c0_38 = arith.constant 0 : index
    %c127 = arith.constant 127 : index
    %87 = vector.load %arg10[%c0_38, %c127] : memref<16x512xf32, #tpu.memory_space<vmem>>, vector<16x256xf32>
    %c0_39 = arith.constant 0 : index
    %c11 = arith.constant 11 : index
    %88 = vector.load %arg4[%c0_39, %c11] : memref<16x25xf32, #tpu.memory_space<vmem>>, vector<16x1xf32>
    %89 = vector.broadcast %88 : vector<16x1xf32> to vector<16x256xf32>
    %90 = arith.mulf %87, %89 : vector<16x256xf32>
    %91 = arith.addf %86, %90 : vector<16x256xf32>
    %c0_40 = arith.constant 0 : index
    %c143 = arith.constant 143 : index
    %92 = vector.load %arg10[%c0_40, %c143] : memref<16x512xf32, #tpu.memory_space<vmem>>, vector<16x256xf32>
    %c0_41 = arith.constant 0 : index
    %c16 = arith.constant 16 : index
    %93 = vector.load %arg4[%c0_41, %c16] : memref<16x25xf32, #tpu.memory_space<vmem>>, vector<16x1xf32>
    %94 = vector.broadcast %93 : vector<16x1xf32> to vector<16x256xf32>
    %95 = arith.mulf %92, %94 : vector<16x256xf32>
    %96 = arith.addf %91, %95 : vector<16x256xf32>
    %c0_42 = arith.constant 0 : index
    %c159 = arith.constant 159 : index
    %97 = vector.load %arg10[%c0_42, %c159] : memref<16x512xf32, #tpu.memory_space<vmem>>, vector<16x256xf32>
    %c0_43 = arith.constant 0 : index
    %c21 = arith.constant 21 : index
    %98 = vector.load %arg4[%c0_43, %c21] : memref<16x25xf32, #tpu.memory_space<vmem>>, vector<16x1xf32>
    %99 = vector.broadcast %98 : vector<16x1xf32> to vector<16x256xf32>
    %100 = arith.mulf %97, %99 : vector<16x256xf32>
    %101 = arith.addf %96, %100 : vector<16x256xf32>
    %c-1_i32 = arith.constant -1 : i32
    %102 = vector.broadcast %c-1_i32 : i32 to vector<16x256xi32>
    %103 = arith.addi %36, %102 : vector<16x256xi32>
    %c0_i32_44 = arith.constant 0 : i32
    %104 = vector.broadcast %c0_i32_44 : i32 to vector<16x256xi32>
    %105 = arith.cmpi sge, %103, %104 : vector<16x256xi32>
    %c-1_i32_45 = arith.constant -1 : i32
    %106 = vector.broadcast %c-1_i32_45 : i32 to vector<16x256xi32>
    %107 = arith.addi %36, %106 : vector<16x256xi32>
    %c16_i32_46 = arith.constant 16 : i32
    %108 = vector.broadcast %c16_i32_46 : i32 to vector<16x256xi32>
    %109 = arith.cmpi slt, %107, %108 : vector<16x256xi32>
    %110 = arith.andi %105, %109 : vector<16x256xi1>
    %cst_47 = arith.constant 0.000000e+00 : f32
    %111 = vector.broadcast %cst_47 : f32 to vector<16x256xf32>
    %112 = arith.select %110, %101, %111 : vector<16x256xi1>, vector<16x256xf32>
    %113 = arith.addf %75, %112 : vector<16x256xf32>
    %cst_48 = arith.constant 0.000000e+00 : f32
    %114 = vector.broadcast %cst_48 : f32 to vector<16x256xf32>
    %c0_49 = arith.constant 0 : index
    %c96 = arith.constant 96 : index
    %115 = vector.load %arg10[%c0_49, %c96] : memref<16x512xf32, #tpu.memory_space<vmem>>, vector<16x256xf32>
    %c0_50 = arith.constant 0 : index
    %c2 = arith.constant 2 : index
    %116 = vector.load %arg4[%c0_50, %c2] : memref<16x25xf32, #tpu.memory_space<vmem>>, vector<16x1xf32>
    %117 = vector.broadcast %116 : vector<16x1xf32> to vector<16x256xf32>
    %118 = arith.mulf %115, %117 : vector<16x256xf32>
    %119 = arith.addf %114, %118 : vector<16x256xf32>
    %c0_51 = arith.constant 0 : index
    %c112 = arith.constant 112 : index
    %120 = vector.load %arg10[%c0_51, %c112] : memref<16x512xf32, #tpu.memory_space<vmem>>, vector<16x256xf32>
    %c0_52 = arith.constant 0 : index
    %c7 = arith.constant 7 : index
    %121 = vector.load %arg4[%c0_52, %c7] : memref<16x25xf32, #tpu.memory_space<vmem>>, vector<16x1xf32>
    %122 = vector.broadcast %121 : vector<16x1xf32> to vector<16x256xf32>
    %123 = arith.mulf %120, %122 : vector<16x256xf32>
    %124 = arith.addf %119, %123 : vector<16x256xf32>
    %c0_53 = arith.constant 0 : index
    %c128_54 = arith.constant 128 : index
    %125 = vector.load %arg10[%c0_53, %c128_54] : memref<16x512xf32, #tpu.memory_space<vmem>>, vector<16x256xf32>
    %c0_55 = arith.constant 0 : index
    %c12 = arith.constant 12 : index
    %126 = vector.load %arg4[%c0_55, %c12] : memref<16x25xf32, #tpu.memory_space<vmem>>, vector<16x1xf32>
    %127 = vector.broadcast %126 : vector<16x1xf32> to vector<16x256xf32>
    %128 = arith.mulf %125, %127 : vector<16x256xf32>
    %129 = arith.addf %124, %128 : vector<16x256xf32>
    %c0_56 = arith.constant 0 : index
    %c144 = arith.constant 144 : index
    %130 = vector.load %arg10[%c0_56, %c144] : memref<16x512xf32, #tpu.memory_space<vmem>>, vector<16x256xf32>
    %c0_57 = arith.constant 0 : index
    %c17 = arith.constant 17 : index
    %131 = vector.load %arg4[%c0_57, %c17] : memref<16x25xf32, #tpu.memory_space<vmem>>, vector<16x1xf32>
    %132 = vector.broadcast %131 : vector<16x1xf32> to vector<16x256xf32>
    %133 = arith.mulf %130, %132 : vector<16x256xf32>
    %134 = arith.addf %129, %133 : vector<16x256xf32>
    %c0_58 = arith.constant 0 : index
    %c160 = arith.constant 160 : index
    %135 = vector.load %arg10[%c0_58, %c160] : memref<16x512xf32, #tpu.memory_space<vmem>>, vector<16x256xf32>
    %c0_59 = arith.constant 0 : index
    %c22 = arith.constant 22 : index
    %136 = vector.load %arg4[%c0_59, %c22] : memref<16x25xf32, #tpu.memory_space<vmem>>, vector<16x1xf32>
    %137 = vector.broadcast %136 : vector<16x1xf32> to vector<16x256xf32>
    %138 = arith.mulf %135, %137 : vector<16x256xf32>
    %139 = arith.addf %134, %138 : vector<16x256xf32>
    %140 = arith.addf %113, %139 : vector<16x256xf32>
    %cst_60 = arith.constant 0.000000e+00 : f32
    %141 = vector.broadcast %cst_60 : f32 to vector<16x256xf32>
    %c0_61 = arith.constant 0 : index
    %c97 = arith.constant 97 : index
    %142 = vector.load %arg10[%c0_61, %c97] : memref<16x512xf32, #tpu.memory_space<vmem>>, vector<16x256xf32>
    %c0_62 = arith.constant 0 : index
    %c3 = arith.constant 3 : index
    %143 = vector.load %arg4[%c0_62, %c3] : memref<16x25xf32, #tpu.memory_space<vmem>>, vector<16x1xf32>
    %144 = vector.broadcast %143 : vector<16x1xf32> to vector<16x256xf32>
    %145 = arith.mulf %142, %144 : vector<16x256xf32>
    %146 = arith.addf %141, %145 : vector<16x256xf32>
    %c0_63 = arith.constant 0 : index
    %c113 = arith.constant 113 : index
    %147 = vector.load %arg10[%c0_63, %c113] : memref<16x512xf32, #tpu.memory_space<vmem>>, vector<16x256xf32>
    %c0_64 = arith.constant 0 : index
    %c8 = arith.constant 8 : index
    %148 = vector.load %arg4[%c0_64, %c8] : memref<16x25xf32, #tpu.memory_space<vmem>>, vector<16x1xf32>
    %149 = vector.broadcast %148 : vector<16x1xf32> to vector<16x256xf32>
    %150 = arith.mulf %147, %149 : vector<16x256xf32>
    %151 = arith.addf %146, %150 : vector<16x256xf32>
    %c0_65 = arith.constant 0 : index
    %c129 = arith.constant 129 : index
    %152 = vector.load %arg10[%c0_65, %c129] : memref<16x512xf32, #tpu.memory_space<vmem>>, vector<16x256xf32>
    %c0_66 = arith.constant 0 : index
    %c13 = arith.constant 13 : index
    %153 = vector.load %arg4[%c0_66, %c13] : memref<16x25xf32, #tpu.memory_space<vmem>>, vector<16x1xf32>
    %154 = vector.broadcast %153 : vector<16x1xf32> to vector<16x256xf32>
    %155 = arith.mulf %152, %154 : vector<16x256xf32>
    %156 = arith.addf %151, %155 : vector<16x256xf32>
    %c0_67 = arith.constant 0 : index
    %c145 = arith.constant 145 : index
    %157 = vector.load %arg10[%c0_67, %c145] : memref<16x512xf32, #tpu.memory_space<vmem>>, vector<16x256xf32>
    %c0_68 = arith.constant 0 : index
    %c18 = arith.constant 18 : index
    %158 = vector.load %arg4[%c0_68, %c18] : memref<16x25xf32, #tpu.memory_space<vmem>>, vector<16x1xf32>
    %159 = vector.broadcast %158 : vector<16x1xf32> to vector<16x256xf32>
    %160 = arith.mulf %157, %159 : vector<16x256xf32>
    %161 = arith.addf %156, %160 : vector<16x256xf32>
    %c0_69 = arith.constant 0 : index
    %c161 = arith.constant 161 : index
    %162 = vector.load %arg10[%c0_69, %c161] : memref<16x512xf32, #tpu.memory_space<vmem>>, vector<16x256xf32>
    %c0_70 = arith.constant 0 : index
    %c23 = arith.constant 23 : index
    %163 = vector.load %arg4[%c0_70, %c23] : memref<16x25xf32, #tpu.memory_space<vmem>>, vector<16x1xf32>
    %164 = vector.broadcast %163 : vector<16x1xf32> to vector<16x256xf32>
    %165 = arith.mulf %162, %164 : vector<16x256xf32>
    %166 = arith.addf %161, %165 : vector<16x256xf32>
    %c1_i32_71 = arith.constant 1 : i32
    %167 = vector.broadcast %c1_i32_71 : i32 to vector<16x256xi32>
    %168 = arith.addi %36, %167 : vector<16x256xi32>
    %c0_i32_72 = arith.constant 0 : i32
    %169 = vector.broadcast %c0_i32_72 : i32 to vector<16x256xi32>
    %170 = arith.cmpi sge, %168, %169 : vector<16x256xi32>
    %c1_i32_73 = arith.constant 1 : i32
    %171 = vector.broadcast %c1_i32_73 : i32 to vector<16x256xi32>
    %172 = arith.addi %36, %171 : vector<16x256xi32>
    %c16_i32_74 = arith.constant 16 : i32
    %173 = vector.broadcast %c16_i32_74 : i32 to vector<16x256xi32>
    %174 = arith.cmpi slt, %172, %173 : vector<16x256xi32>
    %175 = arith.andi %170, %174 : vector<16x256xi1>
    %cst_75 = arith.constant 0.000000e+00 : f32
    %176 = vector.broadcast %cst_75 : f32 to vector<16x256xf32>
    %177 = arith.select %175, %166, %176 : vector<16x256xi1>, vector<16x256xf32>
    %178 = arith.addf %140, %177 : vector<16x256xf32>
    %cst_76 = arith.constant 0.000000e+00 : f32
    %179 = vector.broadcast %cst_76 : f32 to vector<16x256xf32>
    %c0_77 = arith.constant 0 : index
    %c98 = arith.constant 98 : index
    %180 = vector.load %arg10[%c0_77, %c98] : memref<16x512xf32, #tpu.memory_space<vmem>>, vector<16x256xf32>
    %c0_78 = arith.constant 0 : index
    %c4 = arith.constant 4 : index
    %181 = vector.load %arg4[%c0_78, %c4] : memref<16x25xf32, #tpu.memory_space<vmem>>, vector<16x1xf32>
    %182 = vector.broadcast %181 : vector<16x1xf32> to vector<16x256xf32>
    %183 = arith.mulf %180, %182 : vector<16x256xf32>
    %184 = arith.addf %179, %183 : vector<16x256xf32>
    %c0_79 = arith.constant 0 : index
    %c114 = arith.constant 114 : index
    %185 = vector.load %arg10[%c0_79, %c114] : memref<16x512xf32, #tpu.memory_space<vmem>>, vector<16x256xf32>
    %c0_80 = arith.constant 0 : index
    %c9 = arith.constant 9 : index
    %186 = vector.load %arg4[%c0_80, %c9] : memref<16x25xf32, #tpu.memory_space<vmem>>, vector<16x1xf32>
    %187 = vector.broadcast %186 : vector<16x1xf32> to vector<16x256xf32>
    %188 = arith.mulf %185, %187 : vector<16x256xf32>
    %189 = arith.addf %184, %188 : vector<16x256xf32>
    %c0_81 = arith.constant 0 : index
    %c130 = arith.constant 130 : index
    %190 = vector.load %arg10[%c0_81, %c130] : memref<16x512xf32, #tpu.memory_space<vmem>>, vector<16x256xf32>
    %c0_82 = arith.constant 0 : index
    %c14 = arith.constant 14 : index
    %191 = vector.load %arg4[%c0_82, %c14] : memref<16x25xf32, #tpu.memory_space<vmem>>, vector<16x1xf32>
    %192 = vector.broadcast %191 : vector<16x1xf32> to vector<16x256xf32>
    %193 = arith.mulf %190, %192 : vector<16x256xf32>
    %194 = arith.addf %189, %193 : vector<16x256xf32>
    %c0_83 = arith.constant 0 : index
    %c146 = arith.constant 146 : index
    %195 = vector.load %arg10[%c0_83, %c146] : memref<16x512xf32, #tpu.memory_space<vmem>>, vector<16x256xf32>
    %c0_84 = arith.constant 0 : index
    %c19 = arith.constant 19 : index
    %196 = vector.load %arg4[%c0_84, %c19] : memref<16x25xf32, #tpu.memory_space<vmem>>, vector<16x1xf32>
    %197 = vector.broadcast %196 : vector<16x1xf32> to vector<16x256xf32>
    %198 = arith.mulf %195, %197 : vector<16x256xf32>
    %199 = arith.addf %194, %198 : vector<16x256xf32>
    %c0_85 = arith.constant 0 : index
    %c162 = arith.constant 162 : index
    %200 = vector.load %arg10[%c0_85, %c162] : memref<16x512xf32, #tpu.memory_space<vmem>>, vector<16x256xf32>
    %c0_86 = arith.constant 0 : index
    %c24 = arith.constant 24 : index
    %201 = vector.load %arg4[%c0_86, %c24] : memref<16x25xf32, #tpu.memory_space<vmem>>, vector<16x1xf32>
    %202 = vector.broadcast %201 : vector<16x1xf32> to vector<16x256xf32>
    %203 = arith.mulf %200, %202 : vector<16x256xf32>
    %204 = arith.addf %199, %203 : vector<16x256xf32>
    %c2_i32 = arith.constant 2 : i32
    %205 = vector.broadcast %c2_i32 : i32 to vector<16x256xi32>
    %206 = arith.addi %36, %205 : vector<16x256xi32>
    %c0_i32_87 = arith.constant 0 : i32
    %207 = vector.broadcast %c0_i32_87 : i32 to vector<16x256xi32>
    %208 = arith.cmpi sge, %206, %207 : vector<16x256xi32>
    %c2_i32_88 = arith.constant 2 : i32
    %209 = vector.broadcast %c2_i32_88 : i32 to vector<16x256xi32>
    %210 = arith.addi %36, %209 : vector<16x256xi32>
    %c16_i32_89 = arith.constant 16 : i32
    %211 = vector.broadcast %c16_i32_89 : i32 to vector<16x256xi32>
    %212 = arith.cmpi slt, %210, %211 : vector<16x256xi32>
    %213 = arith.andi %208, %212 : vector<16x256xi1>
    %cst_90 = arith.constant 0.000000e+00 : f32
    %214 = vector.broadcast %cst_90 : f32 to vector<16x256xf32>
    %215 = arith.select %213, %204, %214 : vector<16x256xi1>, vector<16x256xf32>
    %216 = arith.addf %178, %215 : vector<16x256xf32>
    %c0_91 = arith.constant 0 : index
    %c0_92 = arith.constant 0 : index
    %217 = vector.load %arg5[%c0_91, %c0_92] : memref<16x1xf32, #tpu.memory_space<vmem>>, vector<16x1xf32>
    %218 = vector.broadcast %217 : vector<16x1xf32> to vector<16x256xf32>
    %219 = arith.addf %216, %218 : vector<16x256xf32>
    %c0_93 = arith.constant 0 : index
    %c0_94 = arith.constant 0 : index
    %220 = vector.load %arg6[%c0_93, %c0_94] : memref<32x16xf32, #tpu.memory_space<vmem>>, vector<32x16xf32>
    %cst_95 = arith.constant dense<0.000000e+00> : vector<32x256xf32>
    %221 = tpu.matmul %220, %219, %cst_95 {dimension_numbers = #tpu.dot_dimension_numbers<[1], [0], [0], [1], [0, 0, 1, 1], [], []>} : vector<32x16xf32>, vector<16x256xf32>, vector<32x256xf32> -> vector<32x256xf32>
    %c0_96 = arith.constant 0 : index
    %c0_97 = arith.constant 0 : index
    %222 = vector.load %arg7[%c0_96, %c0_97] : memref<32x1xf32, #tpu.memory_space<vmem>>, vector<32x1xf32>
    %223 = vector.broadcast %222 : vector<32x1xf32> to vector<32x256xf32>
    %224 = arith.addf %221, %223 : vector<32x256xf32>
    %225 = arith.negf %224 : vector<32x256xf32>
    %226 = math.exp %225 : vector<32x256xf32>
    %cst_98 = arith.constant 1.000000e+00 : f32
    %227 = vector.broadcast %cst_98 : f32 to vector<32x256xf32>
    %228 = arith.addf %227, %226 : vector<32x256xf32>
    %229 = arith.divf %227, %228 : vector<32x256xf32>
    %230 = arith.mulf %224, %229 : vector<32x256xf32>
    %c0_99 = arith.constant 0 : index
    %c0_100 = arith.constant 0 : index
    %231 = vector.load %arg8[%c0_99, %c0_100] : memref<32x16xf32, #tpu.memory_space<vmem>>, vector<32x16xf32>
    %cst_101 = arith.constant dense<0.000000e+00> : vector<32x256xf32>
    %232 = tpu.matmul %231, %6, %cst_101 {dimension_numbers = #tpu.dot_dimension_numbers<[1], [0], [0], [1], [0, 0, 1, 1], [], []>} : vector<32x16xf32>, vector<16x256xf32>, vector<32x256xf32> -> vector<32x256xf32>
    %233 = arith.addf %230, %232 : vector<32x256xf32>
    %c0_102 = arith.constant 0 : index
    %c0_103 = arith.constant 0 : index
    %c0_104 = arith.constant 0 : index
    %234 = vector.load %arg9[%c0_102, %c0_103, %c0_104] : memref<1x32x256xf32, #tpu.memory_space<vmem>>, vector<1x32x256xf32>
    %235 = vector.shape_cast %234 : vector<1x32x256xf32> to vector<32x256xf32>
    %236 = vector.shape_cast %233 : vector<32x256xf32> to vector<1x32x256xf32>
    tpu.vector_store %arg9[%c0_102, %c0_103, %c0_104], %236 {strides = array<i32>} : memref<1x32x256xf32, #tpu.memory_space<vmem>>, vector<1x32x256xf32>,
    return
  }
  func.func @transform_0(%arg0: i32) -> (i32, i32, i32) {
    %c0_i32 = arith.constant 0 : i32
    %c0_i32_0 = arith.constant 0 : i32
    %c0_i32_1 = arith.constant 0 : i32
    return %arg0, %c0_i32, %c0_i32_0 : i32, i32, i32
  }
  func.func @transform_1(%arg0: i32) -> (i32, i32) {
    %c0_i32 = arith.constant 0 : i32
    %c0_i32_0 = arith.constant 0 : i32
    %c0_i32_1 = arith.constant 0 : i32
    return %c0_i32, %c0_i32_0 : i32, i32
  }
  func.func @transform_2(%arg0: i32) -> (i32, i32) {
    %c0_i32 = arith.constant 0 : i32
    %c0_i32_0 = arith.constant 0 : i32
    %c0_i32_1 = arith.constant 0 : i32
    return %c0_i32, %c0_i32_0 : i32, i32
  }
  func.func @transform_3(%arg0: i32) -> (i32, i32) {
    %c0_i32 = arith.constant 0 : i32
    %c0_i32_0 = arith.constant 0 : i32
    %c0_i32_1 = arith.constant 0 : i32
    return %c0_i32, %c0_i32_0 : i32, i32
  }
  func.func @transform_4(%arg0: i32) -> (i32, i32) {
    %c0_i32 = arith.constant 0 : i32
    %c0_i32_0 = arith.constant 0 : i32
    %c0_i32_1 = arith.constant 0 : i32
    return %c0_i32, %c0_i32_0 : i32, i32
  }
  func.func @transform_5(%arg0: i32) -> (i32, i32) {
    %c0_i32 = arith.constant 0 : i32
    %c0_i32_0 = arith.constant 0 : i32
    %c0_i32_1 = arith.constant 0 : i32
    return %c0_i32, %c0_i32_0 : i32, i32
  }
  func.func @transform_6(%arg0: i32) -> (i32, i32) {
    %c0_i32 = arith.constant 0 : i32
    %c0_i32_0 = arith.constant 0 : i32
    %c0_i32_1 = arith.constant 0 : i32
    return %c0_i32, %c0_i32_0 : i32, i32
  }
  func.func @transform_7(%arg0: i32) -> (i32, i32) {
    %c0_i32 = arith.constant 0 : i32
    %c0_i32_0 = arith.constant 0 : i32
    %c0_i32_1 = arith.constant 0 : i32
    return %c0_i32, %c0_i32_0 : i32, i32
  }
  func.func @transform_8(%arg0: i32) -> (i32, i32, i32) {
    %c0_i32 = arith.constant 0 : i32
    %c0_i32_0 = arith.constant 0 : i32
    %c0_i32_1 = arith.constant 0 : i32
    return %arg0, %c0_i32, %c0_i32_0 : i32, i32, i32
  }
}

</mosaic_0001>

<llo_original>
// kernel: shufflev2_block.1
$region0: #{shufflev2_block.1}
  #allocation0 [shape = 'u32[]', space=smem, size = 0x4, offset = 0x4, fixed_abs, tag = 'smem constant byte address 0x4 - core index']
  #allocation1 [shape = 'u32[144,128]{1,0:T(1,128)}', space=vmem, size = 0x12000, scoped, tag = 'internal scratch']
  #allocation2 [shape = 'f32[16,512]{1,0:T(8,128)}', space=vmem, size = 0x8000, scoped, tag = 'scratch operand']
  %s0 = inlined_call_operand.vmem [shape: f32[2,32,256], index: 0, kind: input, shape index: {}]
  %s1 = inlined_call_operand.vmem [shape: f32[16,16], index: 1, kind: input, shape index: {}]
  %s2 = inlined_call_operand.vmem [shape: f32[16,1], index: 2, kind: input, shape index: {}]
  %s3 = inlined_call_operand.vmem [shape: f32[16,25], index: 3, kind: input, shape index: {}]
  %s4 = inlined_call_operand.vmem [shape: f32[16,1], index: 4, kind: input, shape index: {}]
  %s5 = inlined_call_operand.vmem [shape: f32[32,16], index: 5, kind: input, shape index: {}]
  %s6 = inlined_call_operand.vmem [shape: f32[32,1], index: 6, kind: input, shape index: {}]
  %s7 = inlined_call_operand.vmem [shape: f32[32,16], index: 7, kind: input, shape index: {}]
  %s8 = inlined_call_operand.vmem [shape: f32[2,32,256], index: 8, kind: output, shape index: {}]
  %s9 = sld [smem:[#allocation0]]
  $region65: #{shufflev2_block.1} parent=0
    _
  %s11 = ssub.s32 1, %s9
  %s12 = scalar_select 0, %s11, %s9
  loop: start=0, step=1, limit=4
  $region2: #{shufflev2_block.1} parent=0 // loop_pre_header
    _
  $region3: #{shufflev2_block.1} parent=0 // loop_header
    %s14 = sphi 0, %s18
    %p15 = scmp.ge.s32.totalorder %s14, 4
    %s24 = sphi 0, %s26
    %s27 = sphi 0, %s24
    %s28 = sphi 0, %s27
    %s44 = sphi 0, %s28
    %s48 = sphi 0, %s48
    %s50 = sphi 0, %s48
    %s51 = sphi 0, %s50
    %s65 = sphi 0, %s51
    %s69 = sphi 0, %s69
    %s71 = sphi 0, %s69
    %s72 = sphi 0, %s71
    %s86 = sphi 0, %s72
    %s90 = sphi 0, %s90
    %s92 = sphi 0, %s90
    %s93 = sphi 0, %s92
    %s107 = sphi 0, %s93
    %s111 = sphi 0, %s111
    %s113 = sphi 0, %s111
    %s114 = sphi 0, %s113
    %s128 = sphi 0, %s114
    %s132 = sphi 0, %s132
    %s134 = sphi 0, %s132
    %s135 = sphi 0, %s134
    %s149 = sphi 0, %s135
    %s153 = sphi 0, %s153
    %s155 = sphi 0, %s153
    %s156 = sphi 0, %s155
    %s170 = sphi 0, %s156
    %s174 = sphi 0, %s174
    %s176 = sphi 0, %s174
    %s177 = sphi 0, %s176
    %s191 = sphi 0, %s177
    %s197 = sphi 0, %s199
    %s200 = sphi 0, %s197
    %s201 = sphi 0, %s200
    %s217 = sphi 0, %s201
  $region4: #{shufflev2_block.1} parent=0 // loop_header_branch
    %17 = sbr.rel (%p15) target = $region8
  $region5: #{shufflev2_block.1} parent=0 // loop_body
    %s19 = ssub.s32 %s14, 1
    %s20 = ssub.s32 %s14, 2
    %s21 = sadd.s32 %s14, 1
    %s22 = ssub.s32 %s14, %s21
    %p23 = scmp.eq.s32.totalorder %s22, 0
    %s25 = sadd.s32 %s24, 1
    %s26 = scalar_select %p23, %s24, %s25
    %p29 = pneg %p23
    %p30 = scmp.eq.s32.totalorder %s14, 1
    %p31 = por %p29, %p30
    %p32 = scmp.ne.s32.totalorder %s24, %s27
    %p33 = scmp.eq.s32.totalorder %s14, 0
    %p34 = por %p32, %p33
    %p35 = scmp.ne.s32.totalorder %s24, %s27
    %p36 = scmp.eq.s32.totalorder %s19, 1
    %p37 = por %p35, %p36
    %p38 = scmp.ne.s32.totalorder %s27, %s28
    %p39 = scmp.eq.s32.totalorder %s19, 0
    %p40 = por %p38, %p39
    %p41 = scmp.ne.s32.totalorder %s27, %s28
    %p42 = scmp.eq.s32.totalorder %s20, 1
    %p43 = por %p41, %p42
    %p45 = scmp.ne.s32.totalorder %s28, %s44
    %p46 = scmp.eq.s32.totalorder %s20, 0
    %p47 = por %p45, %p46
    %s49 = sadd.s32 %s48, 1
    %p52 = scmp.eq.s32.totalorder %s14, 1
    %p53 = scmp.ne.s32.totalorder %s48, %s50
    %p54 = scmp.eq.s32.totalorder %s14, 0
    %p55 = por %p53, %p54
    %p56 = scmp.ne.s32.totalorder %s48, %s50
    %p57 = scmp.eq.s32.totalorder %s19, 1
    %p58 = por %p56, %p57
    %p59 = scmp.ne.s32.totalorder %s50, %s51
    %p60 = scmp.eq.s32.totalorder %s19, 0
    %p61 = por %p59, %p60
    %p62 = scmp.ne.s32.totalorder %s50, %s51
    %p63 = scmp.eq.s32.totalorder %s20, 1
    %p64 = por %p62, %p63
    %p66 = scmp.ne.s32.totalorder %s51, %s65
    %p67 = scmp.eq.s32.totalorder %s20, 0
    %p68 = por %p66, %p67
    %s70 = sadd.s32 %s69, 1
    %p73 = scmp.eq.s32.totalorder %s14, 1
    %p74 = scmp.ne.s32.totalorder %s69, %s71
    %p75 = scmp.eq.s32.totalorder %s14, 0
    %p76 = por %p74, %p75
    %p77 = scmp.ne.s32.totalorder %s69, %s71
    %p78 = scmp.eq.s32.totalorder %s19, 1
    %p79 = por %p77, %p78
    %p80 = scmp.ne.s32.totalorder %s71, %s72
    %p81 = scmp.eq.s32.totalorder %s19, 0
    %p82 = por %p80, %p81
    %p83 = scmp.ne.s32.totalorder %s71, %s72
    %p84 = scmp.eq.s32.totalorder %s20, 1
    %p85 = por %p83, %p84
    %p87 = scmp.ne.s32.totalorder %s72, %s86
    %p88 = scmp.eq.s32.totalorder %s20, 0
    %p89 = por %p87, %p88
    %s91 = sadd.s32 %s90, 1
    %p94 = scmp.eq.s32.totalorder %s14, 1
    %p95 = scmp.ne.s32.totalorder %s90, %s92
    %p96 = scmp.eq.s32.totalorder %s14, 0
    %p97 = por %p95, %p96
    %p98 = scmp.ne.s32.totalorder %s90, %s92
    %p99 = scmp.eq.s32.totalorder %s19, 1
    %p100 = por %p98, %p99
    %p101 = scmp.ne.s32.totalorder %s92, %s93
    %p102 = scmp.eq.s32.totalorder %s19, 0
    %p103 = por %p101, %p102
    %p104 = scmp.ne.s32.totalorder %s92, %s93
    %p105 = scmp.eq.s32.totalorder %s20, 1
    %p106 = por %p104, %p105
    %p108 = scmp.ne.s32.totalorder %s93, %s107
    %p109 = scmp.eq.s32.totalorder %s20, 0
    %p110 = por %p108, %p109
    %s112 = sadd.s32 %s111, 1
    %p115 = scmp.eq.s32.totalorder %s14, 1
    %p116 = scmp.ne.s32.totalorder %s111, %s113
    %p117 = scmp.eq.s32.totalorder %s14, 0
    %p118 = por %p116, %p117
    %p119 = scmp.ne.s32.totalorder %s111, %s113
    %p120 = scmp.eq.s32.totalorder %s19, 1
    %p121 = por %p119, %p120
    %p122 = scmp.ne.s32.totalorder %s113, %s114
    %p123 = scmp.eq.s32.totalorder %s19, 0
    %p124 = por %p122, %p123
    %p125 = scmp.ne.s32.totalorder %s113, %s114
    %p126 = scmp.eq.s32.totalorder %s20, 1
    %p127 = por %p125, %p126
    %p129 = scmp.ne.s32.totalorder %s114, %s128
    %p130 = scmp.eq.s32.totalorder %s20, 0
    %p131 = por %p129, %p130
    %s133 = sadd.s32 %s132, 1
    %p136 = scmp.eq.s32.totalorder %s14, 1
    %p137 = scmp.ne.s32.totalorder %s132, %s134
    %p138 = scmp.eq.s32.totalorder %s14, 0
    %p139 = por %p137, %p138
    %p140 = scmp.ne.s32.totalorder %s132, %s134
    %p141 = scmp.eq.s32.totalorder %s19, 1
    %p142 = por %p140, %p141
    %p143 = scmp.ne.s32.totalorder %s134, %s135
    %p144 = scmp.eq.s32.totalorder %s19, 0
    %p145 = por %p143, %p144
    %p146 = scmp.ne.s32.totalorder %s134, %s135
    %p147 = scmp.eq.s32.totalorder %s20, 1
    %p148 = por %p146, %p147
    %p150 = scmp.ne.s32.totalorder %s135, %s149
    %p151 = scmp.eq.s32.totalorder %s20, 0
    %p152 = por %p150, %p151
    %s154 = sadd.s32 %s153, 1
    %p157 = scmp.eq.s32.totalorder %s14, 1
    %p158 = scmp.ne.s32.totalorder %s153, %s155
    %p159 = scmp.eq.s32.totalorder %s14, 0
    %p160 = por %p158, %p159
    %p161 = scmp.ne.s32.totalorder %s153, %s155
    %p162 = scmp.eq.s32.totalorder %s19, 1
    %p163 = por %p161, %p162
    %p164 = scmp.ne.s32.totalorder %s155, %s156
    %p165 = scmp.eq.s32.totalorder %s19, 0
    %p166 = por %p164, %p165
    %p167 = scmp.ne.s32.totalorder %s155, %s156
    %p168 = scmp.eq.s32.totalorder %s20, 1
    %p169 = por %p167, %p168
    %p171 = scmp.ne.s32.totalorder %s156, %s170
    %p172 = scmp.eq.s32.totalorder %s20, 0
    %p173 = por %p171, %p172
    %s175 = sadd.s32 %s174, 1
    %p178 = scmp.eq.s32.totalorder %s14, 1
    %p179 = scmp.ne.s32.totalorder %s174, %s176
    %p180 = scmp.eq.s32.totalorder %s14, 0
    %p181 = por %p179, %p180
    %p182 = scmp.ne.s32.totalorder %s174, %s176
    %p183 = scmp.eq.s32.totalorder %s19, 1
    %p184 = por %p182, %p183
    %p185 = scmp.ne.s32.totalorder %s176, %s177
    %p186 = scmp.eq.s32.totalorder %s19, 0
    %p187 = por %p185, %p186
    %p188 = scmp.ne.s32.totalorder %s176, %s177
    %p189 = scmp.eq.s32.totalorder %s20, 1
    %p190 = por %p188, %p189
    %p192 = scmp.ne.s32.totalorder %s177, %s191
    %p193 = scmp.eq.s32.totalorder %s20, 0
    %p194 = por %p192, %p193
    %s195 = ssub.s32 %s14, %s21
    %p196 = scmp.eq.s32.totalorder %s195, 0
    %s198 = sadd.s32 %s197, 1
    %s199 = scalar_select %p196, %s197, %s198
    %p202 = pneg %p196
    %p203 = scmp.eq.s32.totalorder %s14, 1
    %p204 = por %p202, %p203
    %p205 = scmp.ne.s32.totalorder %s197, %s200
    %p206 = scmp.eq.s32.totalorder %s14, 0
    %p207 = por %p205, %p206
    %p208 = scmp.ne.s32.totalorder %s197, %s200
    %p209 = scmp.eq.s32.totalorder %s19, 1
    %p210 = por %p208, %p209
    %p211 = scmp.ne.s32.totalorder %s200, %s201
    %p212 = scmp.eq.s32.totalorder %s19, 0
    %p213 = por %p211, %p212
    %p214 = scmp.ne.s32.totalorder %s200, %s201
    %p215 = scmp.eq.s32.totalorder %s20, 1
    %p216 = por %p214, %p215
    %p218 = scmp.ne.s32.totalorder %s201, %s217
    %p219 = scmp.eq.s32.totalorder %s20, 0
    %p220 = por %p218, %p219
    %p221 = scmp.le.s32.totalorder 1, %s14
    %p222 = scmp.lt.s32.totalorder %s14, 3
    %p223 = pnand %p221, %p222
    %p224 = pneg %p223
    // Predicated region
    $region9: #{shufflev2_block.1} parent=5 // pred_check
      _
    $region10: #{shufflev2_block.1} parent=5 // pred_check_branch
      %226 = sbr.rel (%p223) target = $region12
    $region11: #{shufflev2_block.1} parent=5 // pred_region
      %s227 = ssub.s32 %s14, 1
      // Predicated region
      $region13: #{shufflev2_block.1} parent=11 // pred_check
        %p228 = pneg %p61
      $region14: #{shufflev2_block.1} parent=11 // pred_check_branch
        %230 = sbr.rel (%p228) target = $region16
      $region15: #{shufflev2_block.1} parent=11 // pred_region
        _
      $region16: #{shufflev2_block.1} parent=11 // pred_fallthru
        _
      // Predicated region
      $region17: #{shufflev2_block.1} parent=11 // pred_check
        %p231 = pneg %p82
      $region18: #{shufflev2_block.1} parent=11 // pred_check_branch
        %233 = sbr.rel (%p231) target = $region20
      $region19: #{shufflev2_block.1} parent=11 // pred_region
        _
      $region20: #{shufflev2_block.1} parent=11 // pred_fallthru
        _
      // Predicated region
      $region21: #{shufflev2_block.1} parent=11 // pred_check
        %p234 = pneg %p103
      $region22: #{shufflev2_block.1} parent=11 // pred_check_branch
        %236 = sbr.rel (%p234) target = $region24
      $region23: #{shufflev2_block.1} parent=11 // pred_region
        _
      $region24: #{shufflev2_block.1} parent=11 // pred_fallthru
        _
      // Predicated region
      $region25: #{shufflev2_block.1} parent=11 // pred_check
        %p237 = pneg %p124
      $region26: #{shufflev2_block.1} parent=11 // pred_check_branch
        %239 = sbr.rel (%p237) target = $region28
      $region27: #{shufflev2_block.1} parent=11 // pred_region
        _
      $region28: #{shufflev2_block.1} parent=11 // pred_fallthru
        _
      // Predicated region
      $region29: #{shufflev2_block.1} parent=11 // pred_check
        %p240 = pneg %p145
      $region30: #{shufflev2_block.1} parent=11 // pred_check_branch
        %242 = sbr.rel (%p240) target = $region32
      $region31: #{shufflev2_block.1} parent=11 // pred_region
        _
      $region32: #{shufflev2_block.1} parent=11 // pred_fallthru
        _
      // Predicated region
      $region33: #{shufflev2_block.1} parent=11 // pred_check
        %p243 = pneg %p166
      $region34: #{shufflev2_block.1} parent=11 // pred_check_branch
        %245 = sbr.rel (%p243) target = $region36
      $region35: #{shufflev2_block.1} parent=11 // pred_region
        _
      $region36: #{shufflev2_block.1} parent=11 // pred_fallthru
        _
      // Predicated region
      $region37: #{shufflev2_block.1} parent=11 // pred_check
        %p246 = pneg %p187
      $region38: #{shufflev2_block.1} parent=11 // pred_check_branch
        %248 = sbr.rel (%p246) target = $region40
      $region39: #{shufflev2_block.1} parent=11 // pred_region
        _
      $region40: #{shufflev2_block.1} parent=11 // pred_fallthru
        _
    $region12: #{shufflev2_block.1} parent=5 // pred_fallthru
      _
    %p249 = scmp.lt.s32.totalorder %s14, 2
    // Predicated region
    $region41: #{shufflev2_block.1} parent=5 // pred_check
      %p250 = pneg %p249
    $region42: #{shufflev2_block.1} parent=5 // pred_check_branch
      %252 = sbr.rel (%p250) target = $region44
    $region43: #{shufflev2_block.1} parent=5 // pred_region
      // Predicated region
      $region45: #{shufflev2_block.1} parent=43 // pred_check
        %p253 = pneg %p34
      $region46: #{shufflev2_block.1} parent=43 // pred_check_branch
        %255 = sbr.rel (%p253) target = $region48
      $region47: #{shufflev2_block.1} parent=43 // pred_region
        %p256 = scmp.lt.s32.totalorder %s14, 1
        %s257 = scalar_select %p256, %s14, 1
        %s258 = smul.addr %s257, 8
        %s259 = smul.addr %s258, 8
        %s260 = scalar_lea.vmem %s0, %s259
      $region48: #{shufflev2_block.1} parent=43 // pred_fallthru
        _
    $region44: #{shufflev2_block.1} parent=5 // pred_fallthru
      _
    %p261 = scmp.le.s32.totalorder 1, %s14
    %p262 = scmp.lt.s32.totalorder %s14, 3
    %p263 = pnand %p261, %p262
    %p264 = pneg %p263
    // Predicated region
    $region49: #{shufflev2_block.1} parent=5 // pred_check
      _
    $region50: #{shufflev2_block.1} parent=5 // pred_check_branch
      %266 = sbr.rel (%p263) target = $region52
    $region51: #{shufflev2_block.1} parent=5 // pred_region
      %s267 = ssub.s32 %s14, 1
      %p268 = scmp.lt.s32.totalorder %s19, 1
      %s269 = scalar_select %p268, %s19, 1
      %s270 = smul.addr %s269, 8
      %s271 = smul.addr %s270, 8
      %s272 = scalar_lea.vmem %s0, %s271
      %p273 = pneg %p40
      %p274 = pneg %p37
      %p275 = pneg %p61
      %p276 = pneg %p58
      %p277 = pneg %p82
      %p278 = pneg %p79
      %p279 = pneg %p103
      %p280 = pneg %p100
      %p281 = pneg %p124
      %p282 = pneg %p121
      %p283 = pneg %p145
      %p284 = pneg %p142
      %p285 = pneg %p166
      %p286 = pneg %p163
      %p287 = pneg %p187
      %p288 = pneg %p184
      %p289 = pneg %p213
      %p290 = pneg %p210
      %p291 = scmp.lt.s32.totalorder %s19, 1
      %s292 = scalar_select %p291, %s19, 1
      %s293 = smul.addr %s292, 8
      %s294 = smul.addr %s293, 8
      %s295 = scalar_lea.vmem %s8, %s294
      %p296 = scmp.lt.s32.totalorder %s19, 1
      %s297 = scalar_select %p296, %s19, 1
      %s298 = smul.addr %s297, 8
      %s299 = smul.addr %s298, 8
      %s300 = scalar_lea.vmem %s0, %s299
      %p301 = scmp.lt.s32.totalorder %s19, 1
      %s302 = scalar_select %p301, %s19, 1
      %s303 = smul.addr %s302, 8
      %s304 = smul.addr %s303, 8
      %s305 = scalar_lea.vmem %s8, %s304
      %306 = vst [vmem:[#allocation2] sm:$0xff] 0.0
      %307 = vst [vmem:[#allocation2 + $0x20] sm:$0xff] 0.0
      %308 = vst [vmem:[#allocation2 + $0x18] sm:$0xff] 0.0
      %309 = vst [vmem:[#allocation2 + $0x38] sm:$0xff] 0.0
      %v310 = vld [vmem:[%s300] sm:$0xff]
      %v311 = vld [vmem:[%s300 + $0x8] sm:$0xff]
      %v312 = vld [vmem:[%s300 + $0x10] sm:$0xff]
      %v313 = vld [vmem:[%s300 + $0x18] sm:$0xff]
      %v314 = vld [vmem:[%s300 + $0x20] sm:$0xff]
      %v315 = vld [vmem:[%s300 + $0x28] sm:$0xff]
      %v316 = vld [vmem:[%s300 + $0x30] sm:$0xff]
      %v317 = vld [vmem:[%s300 + $0x38] sm:$0xff]
      %v318 = vld [vmem:[%s1] sm:$0xff]
      %v319 = vld [vmem:[%s1 + $0x8] sm:$0xff]
      %v320 = vld [vmem:[%s2] sm:$0xff]
      %v321 = vld [vmem:[%s2 + $0x8] sm:$0xff]
      %323 = vset.pattern.permute.xlu0 0
      %324 = vperm.xlu0 %323, %v320
      %v325 = vpop.permute.xlu0 %324
      %328 = vset.pattern.permute.xlu0 0
      %329 = vperm.xlu0 %328, %v321
      %v330 = vpop.permute.xlu0 %329
      %vm332 = vcmask 130048
      %v334 = vsel %vm332, %v318, 0
      %v337 = vsel %vm332, %v319, 0
      %339 = vmatprep.subr.mxu0 %v315
      %340 = vmatpush1.msra.mxu0 %v314
      %341 = vmatprep.subr.mxu0 %v317
      %342 = vmatpush1.msra.mxu0 %v316
      %343 = vmatprep.subr.mxu0 0.0
      %344 = vmatpush1.msra.mxu0 0.0
      %345 = vmatprep.subr.mxu0 0.0
      %346 = vmatpush1.msra.mxu0 0.0
      %347 = vmatprep.subr.mxu0 0.0
      %348 = vmatpush1.msra.mxu0 0.0
      %349 = vmatprep.subr.mxu0 0.0
      %350 = vmatpush1.msra.mxu0 0.0
      %351 = vmatprep.subr.mxu0 0.0
      %352 = vmatpush1.msra.mxu0 0.0
      %353 = vmatprep.subr.mxu0 0.0
      %354 = vmatpush1.msra.mxu0 0.0
      %355 = vmatprep.subr.mxu0 0.0
      %356 = vmatpush1.msra.mxu0 0.0
      %357 = vmatprep.subr.mxu0 0.0
      %358 = vmatpush1.msra.mxu0 0.0
      %359 = vmatprep.subr.mxu0 0.0
      %360 = vmatpush1.msra.mxu0 0.0
      %361 = vmatprep.subr.mxu0 0.0
      %362 = vmatpush1.msra.mxu0 0.0
      %363 = vmatprep.subr.mxu0 0.0
      %364 = vmatpush1.msra.mxu0 0.0
      %365 = vmatprep.subr.mxu0 0.0
      %366 = vmatpush1.msra.mxu0 0.0
      %367 = vmatprep.subr.mxu0 0.0
      %368 = vmatpush1.msra.mxu0 0.0
      %369 = vmatprep.subr.mxu0 0.0
      %370 = vmatpush1.msra.mxu0 0.0
      %371 = vmatprep.subr.mxu0 0.0
      %372 = vmatpush1.msra.mxu0 0.0
      %373 = vmatprep.subr.mxu0 0.0
      %374 = vmatpush1.msra.mxu0 0.0
      %375 = vmatprep.subr.mxu0 0.0
      %376 = vmatpush1.msra.mxu0 0.0
      %377 = vmatprep.subr.mxu0 0.0
      %378 = vmatpush1.msra.mxu0 0.0
      %379 = vmatprep.subr.mxu0 0.0
      %380 = vmatpush1.msra.mxu0 0.0
      %381 = vmatprep.subr.mxu0 0.0
      %382 = vmatpush1.msra.mxu0 0.0
      %383 = vmatprep.subr.mxu0 0.0
      %384 = vmatpush1.msra.mxu0 0.0
      %385 = vmatprep.subr.mxu0 0.0
      %386 = vmatpush1.msra.mxu0 0.0
      %387 = vmatprep.subr.mxu0 0.0
      %388 = vmatpush1.msra.mxu0 0.0
      %389 = vmatprep.subr.mxu0 0.0
      %390 = vmatpush1.msra.mxu0 0.0
      %391 = vmatprep.subr.mxu0 0.0
      %392 = vmatpush1.msra.mxu0 0.0
      %393 = vmatprep.subr.mxu0 0.0
      %394 = vmatpush1.msra.mxu0 0.0
      %395 = vmatprep.subr.mxu0 0.0
      %396 = vmatpush1.msra.mxu0 0.0
      %397 = vmatprep.subr.mxu0 0.0
      %398 = vmatpush1.msra.mxu0 0.0
      %399 = vmatprep.subr.mxu0 0.0
      %400 = vmatpush1.msra.mxu0 0.0
      %401 = vmatprep.subr.mxu0 0.0
      %402 = vmatpush1.msra.mxu0 0.0
      %403 = vmatprep.mubr.f32.mxu0 0.0
      %404 = vmatmul.mubr.f32.gmra.mrb[0].mxu0 %v334
      %v405 = vpop.f32.mrb[0].mxu0
      %v406 = vadd.f32 %v325, %v405
      %v407 = vpop.f32.mrb[0].mxu0
      %v408 = vadd.f32 %v325, %v407
      %409 = vmatprep.mubr.f32.mxu0 0.0
      %410 = vmatmul.mubr.f32.gmra.mrb[0].mxu0 %v337
      %v411 = vpop.f32.mrb[0].mxu0
      %v412 = vadd.f32 %v330, %v411
      %v413 = vpop.f32.mrb[0].mxu0
      %v414 = vadd.f32 %v330, %v413
      %415 = vdwg.mxu0
      %v416 = vxor.u32 %v406, 2147483648
      %v417 = vxor.u32 %v408, 2147483648
      %v418 = vxor.u32 %v412, 2147483648
      %v419 = vxor.u32 %v414, 2147483648
      %v420 = vmul.f32 %v416, 1.442695
      %v421 = vpow.pop %v420
      %v422 = vmul.f32 %v417, 1.442695
      %v423 = vpow.pop %v422
      %v424 = vmul.f32 %v418, 1.442695
      %v425 = vpow.pop %v424
      %v426 = vmul.f32 %v419, 1.442695
      %v427 = vpow.pop %v426
      %v428 = vadd.f32 %v421, 1.0
      %v429 = vadd.f32 %v423, 1.0
      %v430 = vadd.f32 %v425, 1.0
      %v431 = vadd.f32 %v427, 1.0
      %v432 = vrcp.pop %v428
      %v433 = vmul.f32 1.0, %v432
      %v434 = vrcp.pop %v429
      %v435 = vmul.f32 1.0, %v434
      %v436 = vrcp.pop %v430
      %v437 = vmul.f32 1.0, %v436
      %v438 = vrcp.pop %v431
      %v439 = vmul.f32 1.0, %v438
      %v440 = vmul.f32 %v406, %v433
      %v441 = vmul.f32 %v408, %v435
      %v442 = vmul.f32 %v412, %v437
      %v443 = vmul.f32 %v414, %v439
      %444 = vst [vmem:[#allocation2 + $0x8] sm:$0xff] %v440
      %445 = vst [vmem:[#allocation2 + $0x10] sm:$0xff] %v441
      %446 = vst [vmem:[#allocation2 + $0x28] sm:$0xff] %v442
      %447 = vst [vmem:[#allocation2 + $0x30] sm:$0xff] %v443
      %v448 = vlaneseq
      %v449 = vand.u32 %v448, 127
      %v450 = vadd.s32 %v449, 128
      %vm451 = vcmp.lt.s32.totalorder %v449, 0
      %v452 = vsub.s32 0, %v449
      %v453 = vsel %vm451, %v452, %v449
      %v454 = vshrl.u32 %v453, 4
      %v455 = vand.u32 %v453, 15
      %v456 = vsub.s32 0, %v455
      %v457 = vsel %vm451, %v456, %v455
      %vm458 = vcmp.lt.s32.totalorder %v450, 0
      %v459 = vsub.s32 0, %v450
      %v460 = vsel %vm458, %v459, %v450
      %v461 = vshrl.u32 %v460, 4
      %v462 = vand.u32 %v460, 15
      %v463 = vsub.s32 0, %v462
      %v464 = vsel %vm458, %v463, %v462
      %vm465 = vcmp.ne.s32.totalorder %v457, 0
      %vm466 = vcmp.ne.s32.totalorder %v464, 0
      %vm467 = vcmp.lt.s32.totalorder %v457, 0
      %vm468 = vcmp.lt.s32.totalorder %v464, 0
      %vm469 = vmand %vm467, %vm465
      %vm470 = vmand %vm468, %vm466
      %v471 = vadd.s32 %v457, 16
      %v472 = vadd.s32 %v464, 16
      %v473 = vsel %vm469, %v471, %v457
      %v474 = vsel %vm470, %v472, %v464
      %v475 = vld [vmem:[#allocation2] sm:$0xff]
      %v476 = vld [vmem:[#allocation2 + $0x8] sm:$0xff]
      %v477 = vld [vmem:[#allocation2 + $0x10] sm:$0xff]
      %v478 = vld [vmem:[#allocation2 + $0x20] sm:$0xff]
      %v479 = vld [vmem:[#allocation2 + $0x28] sm:$0xff]
      %v480 = vld [vmem:[#allocation2 + $0x30] sm:$0xff]
      %v481 = vld [vmem:[%s3] sm:$0xff]
      %v482 = vld [vmem:[%s3 + $0x8] sm:$0xff]
      %484 = vset.pattern.permute.xlu0 0
      %485 = vperm.xlu0 %484, %v481
      %v486 = vpop.permute.xlu0 %485
      %489 = vset.pattern.permute.xlu0 0
      %490 = vperm.xlu0 %489, %v482
      %v491 = vpop.permute.xlu0 %490
      %v493 = vmul.f32 %v475, %v486
      %v494 = vmul.f32 %v476, %v486
      %v495 = vmul.f32 %v477, %v486
      %v496 = vmul.f32 %v478, %v491
      %v497 = vmul.f32 %v479, %v491
      %v498 = vmul.f32 %v480, %v491
      %v499 = vadd.f32 %v493, 0.0
      %v500 = vadd.f32 %v494, 0.0
      %v501 = vadd.f32 %v495, 0.0
      %v502 = vadd.f32 %v496, 0.0
      %v503 = vadd.f32 %v497, 0.0
      %v504 = vadd.f32 %v498, 0.0
      %505 = vset.pattern.permute.xlu0 5
      %506 = vperm.xlu0 %505, %v481
      %v507 = vpop.permute.xlu0 %506
      %509 = vset.pattern.permute.xlu0 5
      %510 = vperm.xlu0 %509, %v482
      %v511 = vpop.permute.xlu0 %510
      %v513 = vmul.f32 %v475, %v507
      %v514 = vmul.f32 %v476, %v507
      %v515 = vmul.f32 %v477, %v507
      %v516 = vmul.f32 %v478, %v511
      %v517 = vmul.f32 %v479, %v511
      %v518 = vmul.f32 %v480, %v511
      %525 = vrot.lane.b32.xlu0 %v513, 112
      %v526 = vpop.permute.xlu0 %525
      %527 = vrot.lane.b32.xlu0 %v514, 112
      %v528 = vpop.permute.xlu0 %527
      %529 = vrot.lane.b32.xlu0 %v515, 112
      %v530 = vpop.permute.xlu0 %529
      %531 = vrot.lane.b32.xlu0 %v516, 112
      %v532 = vpop.permute.xlu0 %531
      %533 = vrot.lane.b32.xlu0 %v517, 112
      %v534 = vpop.permute.xlu0 %533
      %535 = vrot.lane.b32.xlu0 %v518, 112
      %v536 = vpop.permute.xlu0 %535
      %vm537 = vcmask 916480
      %v538 = vsel %vm537, %v526, %v528
      %v539 = vsel %vm537, %v528, %v530
      %v540 = vsel %vm537, %v532, %v534
      %v541 = vsel %vm537, %v534, %v536
      %v548 = vadd.f32 %v499, %v538
      %v549 = vadd.f32 %v500, %v539
      %v550 = vadd.f32 %v501, %v530
      %v551 = vadd.f32 %v502, %v540
      %v552 = vadd.f32 %v503, %v541
      %v553 = vadd.f32 %v504, %v536
      %554 = vset.pattern.permute.xlu0 10
      %555 = vperm.xlu0 %554, %v481
      %v556 = vpop.permute.xlu0 %555
      %558 = vset.pattern.permute.xlu0 10
      %559 = vperm.xlu0 %558, %v482
      %v560 = vpop.permute.xlu0 %559
      %v562 = vmul.f32 %v475, %v556
      %v563 = vmul.f32 %v476, %v556
      %v564 = vmul.f32 %v477, %v556
      %v565 = vmul.f32 %v478, %v560
      %v566 = vmul.f32 %v479, %v560
      %v567 = vmul.f32 %v480, %v560
      %574 = vrot.lane.b32.xlu0 %v562, 96
      %v575 = vpop.permute.xlu0 %574
      %576 = vrot.lane.b32.xlu0 %v563, 96
      %v577 = vpop.permute.xlu0 %576
      %578 = vrot.lane.b32.xlu0 %v564, 96
      %v579 = vpop.permute.xlu0 %578
      %580 = vrot.lane.b32.xlu0 %v565, 96
      %v581 = vpop.permute.xlu0 %580
      %582 = vrot.lane.b32.xlu0 %v566, 96
      %v583 = vpop.permute.xlu0 %582
      %584 = vrot.lane.b32.xlu0 %v567, 96
      %v585 = vpop.permute.xlu0 %584
      %vm586 = vcmask 785408
      %v587 = vsel %vm586, %v575, %v577
      %v588 = vsel %vm586, %v577, %v579
      %v589 = vsel %vm586, %v581, %v583
      %v590 = vsel %vm586, %v583, %v585
      %v597 = vadd.f32 %v548, %v587
      %v598 = vadd.f32 %v549, %v588
      %v599 = vadd.f32 %v550, %v579
      %v600 = vadd.f32 %v551, %v589
      %v601 = vadd.f32 %v552, %v590
      %v602 = vadd.f32 %v553, %v585
      %v603 = vld [vmem:[#allocation2 + $0x8] sm:$0xff]
      %v604 = vld [vmem:[#allocation2 + $0x10] sm:$0xff]
      %v605 = vld [vmem:[#allocation2 + $0x18] sm:$0xff]
      %v606 = vld [vmem:[#allocation2 + $0x28] sm:$0xff]
      %v607 = vld [vmem:[#allocation2 + $0x30] sm:$0xff]
      %v608 = vld [vmem:[#allocation2 + $0x38] sm:$0xff]
      %609 = vset.pattern.permute.xlu0 15
      %610 = vperm.xlu0 %609, %v481
      %v611 = vpop.permute.xlu0 %610
      %613 = vset.pattern.permute.xlu0 15
      %614 = vperm.xlu0 %613, %v482
      %v615 = vpop.permute.xlu0 %614
      %v617 = vmul.f32 %v603, %v611
      %v618 = vmul.f32 %v604, %v611
      %v619 = vmul.f32 %v605, %v611
      %v620 = vmul.f32 %v606, %v615
      %v621 = vmul.f32 %v607, %v615
      %v622 = vmul.f32 %v608, %v615
      %629 = vrot.lane.b32.xlu0 %v617, 80
      %v630 = vpop.permute.xlu0 %629
      %631 = vrot.lane.b32.xlu0 %v618, 80
      %v632 = vpop.permute.xlu0 %631
      %633 = vrot.lane.b32.xlu0 %v619, 80
      %v634 = vpop.permute.xlu0 %633
      %635 = vrot.lane.b32.xlu0 %v620, 80
      %v636 = vpop.permute.xlu0 %635
      %637 = vrot.lane.b32.xlu0 %v621, 80
      %v638 = vpop.permute.xlu0 %637
      %639 = vrot.lane.b32.xlu0 %v622, 80
      %v640 = vpop.permute.xlu0 %639
      %vm641 = vcmask 654336
      %v642 = vsel %vm641, %v630, %v632
      %v643 = vsel %vm641, %v632, %v634
      %v644 = vsel %vm641, %v636, %v638
      %v645 = vsel %vm641, %v638, %v640
      %v652 = vadd.f32 %v597, %v630
      %v653 = vadd.f32 %v598, %v642
      %v654 = vadd.f32 %v599, %v643
      %v655 = vadd.f32 %v600, %v636
      %v656 = vadd.f32 %v601, %v644
      %v657 = vadd.f32 %v602, %v645
      %658 = vset.pattern.permute.xlu0 20
      %659 = vperm.xlu0 %658, %v481
      %v660 = vpop.permute.xlu0 %659
      %662 = vset.pattern.permute.xlu0 20
      %663 = vperm.xlu0 %662, %v482
      %v664 = vpop.permute.xlu0 %663
      %v666 = vmul.f32 %v603, %v660
      %v667 = vmul.f32 %v604, %v660
      %v668 = vmul.f32 %v605, %v660
      %v669 = vmul.f32 %v606, %v664
      %v670 = vmul.f32 %v607, %v664
      %v671 = vmul.f32 %v608, %v664
      %678 = vrot.lane.b32.xlu0 %v666, 64
      %v679 = vpop.permute.xlu0 %678
      %680 = vrot.lane.b32.xlu0 %v667, 64
      %v681 = vpop.permute.xlu0 %680
      %682 = vrot.lane.b32.xlu0 %v668, 64
      %v683 = vpop.permute.xlu0 %682
      %684 = vrot.lane.b32.xlu0 %v669, 64
      %v685 = vpop.permute.xlu0 %684
      %686 = vrot.lane.b32.xlu0 %v670, 64
      %v687 = vpop.permute.xlu0 %686
      %688 = vrot.lane.b32.xlu0 %v671, 64
      %v689 = vpop.permute.xlu0 %688
      %vm690 = vcmask 523264
      %v691 = vsel %vm690, %v679, %v681
      %v692 = vsel %vm690, %v681, %v683
      %v693 = vsel %vm690, %v685, %v687
      %v694 = vsel %vm690, %v687, %v689
      %v701 = vadd.f32 %v652, %v679
      %v702 = vadd.f32 %v653, %v691
      %v703 = vadd.f32 %v654, %v692
      %v704 = vadd.f32 %v655, %v685
      %v705 = vadd.f32 %v656, %v693
      %v706 = vadd.f32 %v657, %v694
      %v707 = vadd.s32 %v473, 4294967294
      %v708 = vadd.s32 %v474, 4294967294
      %vm709 = vcmp.ge.s32.totalorder %v707, 0
      %vm710 = vcmp.ge.s32.totalorder %v708, 0
      %vm711 = vcmp.lt.s32.totalorder %v707, 16
      %vm712 = vcmp.lt.s32.totalorder %v708, 16
      %vm713 = vmand %vm709, %vm711
      %vm714 = vmand %vm710, %vm712
      %721 = vrot.lane.b32.xlu0 %v701, 34
      %v722 = vpop.permute.xlu0 %721
      %723 = vrot.lane.b32.xlu0 %v702, 34
      %v724 = vpop.permute.xlu0 %723
      %725 = vrot.lane.b32.xlu0 %v703, 34
      %v726 = vpop.permute.xlu0 %725
      %727 = vrot.lane.b32.xlu0 %v704, 34
      %v728 = vpop.permute.xlu0 %727
      %729 = vrot.lane.b32.xlu0 %v705, 34
      %v730 = vpop.permute.xlu0 %729
      %731 = vrot.lane.b32.xlu0 %v706, 34
      %v732 = vpop.permute.xlu0 %731
      %vm733 = vcmask 277504
      %v734 = vsel %vm733, %v722, %v724
      %v735 = vsel %vm733, %v724, %v726
      %v736 = vsel %vm733, %v728, %v730
      %v737 = vsel %vm733, %v730, %v732
      %v742 = vsel %vm713, %v734, 0.0
      %v743 = vsel %vm714, %v735, 0.0
      %v744 = vsel %vm713, %v736, 0.0
      %v745 = vsel %vm714, %v737, 0.0
      %v746 = vadd.f32 %v742, 0.0
      %v747 = vadd.f32 %v743, 0.0
      %v748 = vadd.f32 %v744, 0.0
      %v749 = vadd.f32 %v745, 0.0
      %750 = vset.pattern.permute.xlu0 1
      %751 = vperm.xlu0 %750, %v481
      %v752 = vpop.permute.xlu0 %751
      %754 = vset.pattern.permute.xlu0 1
      %755 = vperm.xlu0 %754, %v482
      %v756 = vpop.permute.xlu0 %755
      %v758 = vmul.f32 %v475, %v752
      %v759 = vmul.f32 %v476, %v752
      %v760 = vmul.f32 %v477, %v752
      %v761 = vmul.f32 %v478, %v756
      %v762 = vmul.f32 %v479, %v756
      %v763 = vmul.f32 %v480, %v756
      %v764 = vadd.f32 %v758, 0.0
      %v765 = vadd.f32 %v759, 0.0
      %v766 = vadd.f32 %v760, 0.0
      %v767 = vadd.f32 %v761, 0.0
      %v768 = vadd.f32 %v762, 0.0
      %v769 = vadd.f32 %v763, 0.0
      %770 = vset.pattern.permute.xlu0 6
      %771 = vperm.xlu0 %770, %v481
      %v772 = vpop.permute.xlu0 %771
      %774 = vset.pattern.permute.xlu0 6
      %775 = vperm.xlu0 %774, %v482
      %v776 = vpop.permute.xlu0 %775
      %v778 = vmul.f32 %v475, %v772
      %v779 = vmul.f32 %v476, %v772
      %v780 = vmul.f32 %v477, %v772
      %v781 = vmul.f32 %v478, %v776
      %v782 = vmul.f32 %v479, %v776
      %v783 = vmul.f32 %v480, %v776
      %790 = vrot.lane.b32.xlu0 %v778, 112
      %v791 = vpop.permute.xlu0 %790
      %792 = vrot.lane.b32.xlu0 %v779, 112
      %v793 = vpop.permute.xlu0 %792
      %794 = vrot.lane.b32.xlu0 %v780, 112
      %v795 = vpop.permute.xlu0 %794
      %796 = vrot.lane.b32.xlu0 %v781, 112
      %v797 = vpop.permute.xlu0 %796
      %798 = vrot.lane.b32.xlu0 %v782, 112
      %v799 = vpop.permute.xlu0 %798
      %800 = vrot.lane.b32.xlu0 %v783, 112
      %v801 = vpop.permute.xlu0 %800
      %v802 = vsel %vm537, %v791, %v793
      %v803 = vsel %vm537, %v793, %v795
      %v804 = vsel %vm537, %v797, %v799
      %v805 = vsel %vm537, %v799, %v801
      %v812 = vadd.f32 %v764, %v802
      %v813 = vadd.f32 %v765, %v803
      %v814 = vadd.f32 %v766, %v795
      %v815 = vadd.f32 %v767, %v804
      %v816 = vadd.f32 %v768, %v805
      %v817 = vadd.f32 %v769, %v801
      %818 = vset.pattern.permute.xlu0 11
      %819 = vperm.xlu0 %818, %v481
      %v820 = vpop.permute.xlu0 %819
      %822 = vset.pattern.permute.xlu0 11
      %823 = vperm.xlu0 %822, %v482
      %v824 = vpop.permute.xlu0 %823
      %v826 = vmul.f32 %v475, %v820
      %v827 = vmul.f32 %v476, %v820
      %v828 = vmul.f32 %v477, %v820
      %v829 = vmul.f32 %v478, %v824
      %v830 = vmul.f32 %v479, %v824
      %v831 = vmul.f32 %v480, %v824
      %838 = vrot.lane.b32.xlu0 %v826, 96
      %v839 = vpop.permute.xlu0 %838
      %840 = vrot.lane.b32.xlu0 %v827, 96
      %v841 = vpop.permute.xlu0 %840
      %842 = vrot.lane.b32.xlu0 %v828, 96
      %v843 = vpop.permute.xlu0 %842
      %844 = vrot.lane.b32.xlu0 %v829, 96
      %v845 = vpop.permute.xlu0 %844
      %846 = vrot.lane.b32.xlu0 %v830, 96
      %v847 = vpop.permute.xlu0 %846
      %848 = vrot.lane.b32.xlu0 %v831, 96
      %v849 = vpop.permute.xlu0 %848
      %v850 = vsel %vm586, %v839, %v841
      %v851 = vsel %vm586, %v841, %v843
      %v852 = vsel %vm586, %v845, %v847
      %v853 = vsel %vm586, %v847, %v849
      %v860 = vadd.f32 %v812, %v850
      %v861 = vadd.f32 %v813, %v851
      %v862 = vadd.f32 %v814, %v843
      %v863 = vadd.f32 %v815, %v852
      %v864 = vadd.f32 %v816, %v853
      %v865 = vadd.f32 %v817, %v849
      %866 = vset.pattern.permute.xlu0 16
      %867 = vperm.xlu0 %866, %v481
      %v868 = vpop.permute.xlu0 %867
      %870 = vset.pattern.permute.xlu0 16
      %871 = vperm.xlu0 %870, %v482
      %v872 = vpop.permute.xlu0 %871
      %v874 = vmul.f32 %v603, %v868
      %v875 = vmul.f32 %v604, %v868
      %v876 = vmul.f32 %v605, %v868
      %v877 = vmul.f32 %v606, %v872
      %v878 = vmul.f32 %v607, %v872
      %v879 = vmul.f32 %v608, %v872
      %886 = vrot.lane.b32.xlu0 %v874, 80
      %v887 = vpop.permute.xlu0 %886
      %888 = vrot.lane.b32.xlu0 %v875, 80
      %v889 = vpop.permute.xlu0 %888
      %890 = vrot.lane.b32.xlu0 %v876, 80
      %v891 = vpop.permute.xlu0 %890
      %892 = vrot.lane.b32.xlu0 %v877, 80
      %v893 = vpop.permute.xlu0 %892
      %894 = vrot.lane.b32.xlu0 %v878, 80
      %v895 = vpop.permute.xlu0 %894
      %896 = vrot.lane.b32.xlu0 %v879, 80
      %v897 = vpop.permute.xlu0 %896
      %v898 = vsel %vm641, %v887, %v889
      %v899 = vsel %vm641, %v889, %v891
      %v900 = vsel %vm641, %v893, %v895
      %v901 = vsel %vm641, %v895, %v897
      %v908 = vadd.f32 %v860, %v887
      %v909 = vadd.f32 %v861, %v898
      %v910 = vadd.f32 %v862, %v899
      %v911 = vadd.f32 %v863, %v893
      %v912 = vadd.f32 %v864, %v900
      %v913 = vadd.f32 %v865, %v901
      %914 = vset.pattern.permute.xlu0 21
      %915 = vperm.xlu0 %914, %v481
      %v916 = vpop.permute.xlu0 %915
      %918 = vset.pattern.permute.xlu0 21
      %919 = vperm.xlu0 %918, %v482
      %v920 = vpop.permute.xlu0 %919
      %v922 = vmul.f32 %v603, %v916
      %v923 = vmul.f32 %v604, %v916
      %v924 = vmul.f32 %v605, %v916
      %v925 = vmul.f32 %v606, %v920
      %v926 = vmul.f32 %v607, %v920
      %v927 = vmul.f32 %v608, %v920
      %934 = vrot.lane.b32.xlu0 %v922, 64
      %v935 = vpop.permute.xlu0 %934
      %936 = vrot.lane.b32.xlu0 %v923, 64
      %v937 = vpop.permute.xlu0 %936
      %938 = vrot.lane.b32.xlu0 %v924, 64
      %v939 = vpop.permute.xlu0 %938
      %940 = vrot.lane.b32.xlu0 %v925, 64
      %v941 = vpop.permute.xlu0 %940
      %942 = vrot.lane.b32.xlu0 %v926, 64
      %v943 = vpop.permute.xlu0 %942
      %944 = vrot.lane.b32.xlu0 %v927, 64
      %v945 = vpop.permute.xlu0 %944
      %v946 = vsel %vm690, %v935, %v937
      %v947 = vsel %vm690, %v937, %v939
      %v948 = vsel %vm690, %v941, %v943
      %v949 = vsel %vm690, %v943, %v945
      %v956 = vadd.f32 %v908, %v935
      %v957 = vadd.f32 %v909, %v946
      %v958 = vadd.f32 %v910, %v947
      %v959 = vadd.f32 %v911, %v941
      %v960 = vadd.f32 %v912, %v948
      %v961 = vadd.f32 %v913, %v949
      %v962 = vadd.s32 %v473, 4294967295
      %v963 = vadd.s32 %v474, 4294967295
      %vm964 = vcmp.ge.s32.totalorder %v962, 0
      %vm965 = vcmp.ge.s32.totalorder %v963, 0
      %vm966 = vcmp.lt.s32.totalorder %v962, 16
      %vm967 = vcmp.lt.s32.totalorder %v963, 16
      %vm968 = vmand %vm964, %vm966
      %vm969 = vmand %vm965, %vm967
      %976 = vrot.lane.b32.xlu0 %v956, 33
      %v977 = vpop.permute.xlu0 %976
      %978 = vrot.lane.b32.xlu0 %v957, 33
      %v979 = vpop.permute.xlu0 %978
      %980 = vrot.lane.b32.xlu0 %v958, 33
      %v981 = vpop.permute.xlu0 %980
      %982 = vrot.lane.b32.xlu0 %v959, 33
      %v983 = vpop.permute.xlu0 %982
      %984 = vrot.lane.b32.xlu0 %v960, 33
      %v985 = vpop.permute.xlu0 %984
      %986 = vrot.lane.b32.xlu0 %v961, 33
      %v987 = vpop.permute.xlu0 %986
      %vm988 = vcmask 269312
      %v989 = vsel %vm988, %v977, %v979
      %v990 = vsel %vm988, %v979, %v981
      %v991 = vsel %vm988, %v983, %v985
      %v992 = vsel %vm988, %v985, %v987
      %v997 = vsel %vm968, %v989, 0.0
      %v998 = vsel %vm969, %v990, 0.0
      %v999 = vsel %vm968, %v991, 0.0
      %v1000 = vsel %vm969, %v992, 0.0
      %v1001 = vadd.f32 %v746, %v997
      %v1002 = vadd.f32 %v747, %v998
      %v1003 = vadd.f32 %v748, %v999
      %v1004 = vadd.f32 %v749, %v1000
      %1005 = vset.pattern.permute.xlu0 2
      %1006 = vperm.xlu0 %1005, %v481
      %v1007 = vpop.permute.xlu0 %1006
      %1009 = vset.pattern.permute.xlu0 2
      %1010 = vperm.xlu0 %1009, %v482
      %v1011 = vpop.permute.xlu0 %1010
      %v1013 = vmul.f32 %v475, %v1007
      %v1014 = vmul.f32 %v476, %v1007
      %v1015 = vmul.f32 %v477, %v1007
      %v1016 = vmul.f32 %v478, %v1011
      %v1017 = vmul.f32 %v479, %v1011
      %v1018 = vmul.f32 %v480, %v1011
      %v1019 = vadd.f32 %v1013, 0.0
      %v1020 = vadd.f32 %v1014, 0.0
      %v1021 = vadd.f32 %v1015, 0.0
      %v1022 = vadd.f32 %v1016, 0.0
      %v1023 = vadd.f32 %v1017, 0.0
      %v1024 = vadd.f32 %v1018, 0.0
      %1025 = vset.pattern.permute.xlu0 7
      %1026 = vperm.xlu0 %1025, %v481
      %v1027 = vpop.permute.xlu0 %1026
      %1029 = vset.pattern.permute.xlu0 7
      %1030 = vperm.xlu0 %1029, %v482
      %v1031 = vpop.permute.xlu0 %1030
      %v1033 = vmul.f32 %v475, %v1027
      %v1034 = vmul.f32 %v476, %v1027
      %v1035 = vmul.f32 %v477, %v1027
      %v1036 = vmul.f32 %v478, %v1031
      %v1037 = vmul.f32 %v479, %v1031
      %v1038 = vmul.f32 %v480, %v1031
      %1045 = vrot.lane.b32.xlu0 %v1033, 112
      %v1046 = vpop.permute.xlu0 %1045
      %1047 = vrot.lane.b32.xlu0 %v1034, 112
      %v1048 = vpop.permute.xlu0 %1047
      %1049 = vrot.lane.b32.xlu0 %v1035, 112
      %v1050 = vpop.permute.xlu0 %1049
      %1051 = vrot.lane.b32.xlu0 %v1036, 112
      %v1052 = vpop.permute.xlu0 %1051
      %1053 = vrot.lane.b32.xlu0 %v1037, 112
      %v1054 = vpop.permute.xlu0 %1053
      %1055 = vrot.lane.b32.xlu0 %v1038, 112
      %v1056 = vpop.permute.xlu0 %1055
      %v1057 = vsel %vm537, %v1046, %v1048
      %v1058 = vsel %vm537, %v1048, %v1050
      %v1059 = vsel %vm537, %v1052, %v1054
      %v1060 = vsel %vm537, %v1054, %v1056
      %v1067 = vadd.f32 %v1019, %v1057
      %v1068 = vadd.f32 %v1020, %v1058
      %v1069 = vadd.f32 %v1021, %v1050
      %v1070 = vadd.f32 %v1022, %v1059
      %v1071 = vadd.f32 %v1023, %v1060
      %v1072 = vadd.f32 %v1024, %v1056
      %1073 = vset.pattern.permute.xlu0 12
      %1074 = vperm.xlu0 %1073, %v481
      %v1075 = vpop.permute.xlu0 %1074
      %1077 = vset.pattern.permute.xlu0 12
      %1078 = vperm.xlu0 %1077, %v482
      %v1079 = vpop.permute.xlu0 %1078
      %v1081 = vmul.f32 %v476, %v1075
      %v1082 = vmul.f32 %v477, %v1075
      %v1083 = vmul.f32 %v479, %v1079
      %v1084 = vmul.f32 %v480, %v1079
      %1089 = vrot.lane.b32.xlu0 %v1081, 96
      %v1090 = vpop.permute.xlu0 %1089
      %1091 = vrot.lane.b32.xlu0 %v1082, 96
      %v1092 = vpop.permute.xlu0 %1091
      %1093 = vrot.lane.b32.xlu0 %v1083, 96
      %v1094 = vpop.permute.xlu0 %1093
      %1095 = vrot.lane.b32.xlu0 %v1084, 96
      %v1096 = vpop.permute.xlu0 %1095
      %v1097 = vsel %vm586, %v1090, %v1092
      %v1098 = vsel %vm586, %v1094, %v1096
      %v1105 = vadd.f32 %v1067, %v1090
      %v1106 = vadd.f32 %v1068, %v1097
      %v1107 = vadd.f32 %v1069, %v1092
      %v1108 = vadd.f32 %v1070, %v1094
      %v1109 = vadd.f32 %v1071, %v1098
      %v1110 = vadd.f32 %v1072, %v1096
      %1111 = vset.pattern.permute.xlu0 17
      %1112 = vperm.xlu0 %1111, %v481
      %v1113 = vpop.permute.xlu0 %1112
      %1115 = vset.pattern.permute.xlu0 17
      %1116 = vperm.xlu0 %1115, %v482
      %v1117 = vpop.permute.xlu0 %1116
      %v1119 = vmul.f32 %v603, %v1113
      %v1120 = vmul.f32 %v604, %v1113
      %v1121 = vmul.f32 %v605, %v1113
      %v1122 = vmul.f32 %v606, %v1117
      %v1123 = vmul.f32 %v607, %v1117
      %v1124 = vmul.f32 %v608, %v1117
      %1131 = vrot.lane.b32.xlu0 %v1119, 80
      %v1132 = vpop.permute.xlu0 %1131
      %1133 = vrot.lane.b32.xlu0 %v1120, 80
      %v1134 = vpop.permute.xlu0 %1133
      %1135 = vrot.lane.b32.xlu0 %v1121, 80
      %v1136 = vpop.permute.xlu0 %1135
      %1137 = vrot.lane.b32.xlu0 %v1122, 80
      %v1138 = vpop.permute.xlu0 %1137
      %1139 = vrot.lane.b32.xlu0 %v1123, 80
      %v1140 = vpop.permute.xlu0 %1139
      %1141 = vrot.lane.b32.xlu0 %v1124, 80
      %v1142 = vpop.permute.xlu0 %1141
      %v1143 = vsel %vm641, %v1132, %v1134
      %v1144 = vsel %vm641, %v1134, %v1136
      %v1145 = vsel %vm641, %v1138, %v1140
      %v1146 = vsel %vm641, %v1140, %v1142
      %v1153 = vadd.f32 %v1105, %v1132
      %v1154 = vadd.f32 %v1106, %v1143
      %v1155 = vadd.f32 %v1107, %v1144
      %v1156 = vadd.f32 %v1108, %v1138
      %v1157 = vadd.f32 %v1109, %v1145
      %v1158 = vadd.f32 %v1110, %v1146
      %1159 = vset.pattern.permute.xlu0 22
      %1160 = vperm.xlu0 %1159, %v481
      %v1161 = vpop.permute.xlu0 %1160
      %1163 = vset.pattern.permute.xlu0 22
      %1164 = vperm.xlu0 %1163, %v482
      %v1165 = vpop.permute.xlu0 %1164
      %v1167 = vmul.f32 %v603, %v1161
      %v1168 = vmul.f32 %v604, %v1161
      %v1169 = vmul.f32 %v605, %v1161
      %v1170 = vmul.f32 %v606, %v1165
      %v1171 = vmul.f32 %v607, %v1165
      %v1172 = vmul.f32 %v608, %v1165
      %1179 = vrot.lane.b32.xlu0 %v1167, 64
      %v1180 = vpop.permute.xlu0 %1179
      %1181 = vrot.lane.b32.xlu0 %v1168, 64
      %v1182 = vpop.permute.xlu0 %1181
      %1183 = vrot.lane.b32.xlu0 %v1169, 64
      %v1184 = vpop.permute.xlu0 %1183
      %1185 = vrot.lane.b32.xlu0 %v1170, 64
      %v1186 = vpop.permute.xlu0 %1185
      %1187 = vrot.lane.b32.xlu0 %v1171, 64
      %v1188 = vpop.permute.xlu0 %1187
      %1189 = vrot.lane.b32.xlu0 %v1172, 64
      %v1190 = vpop.permute.xlu0 %1189
      %v1191 = vsel %vm690, %v1180, %v1182
      %v1192 = vsel %vm690, %v1182, %v1184
      %v1193 = vsel %vm690, %v1186, %v1188
      %v1194 = vsel %vm690, %v1188, %v1190
      %v1201 = vadd.f32 %v1153, %v1180
      %v1202 = vadd.f32 %v1154, %v1191
      %v1203 = vadd.f32 %v1155, %v1192
      %v1204 = vadd.f32 %v1156, %v1186
      %v1205 = vadd.f32 %v1157, %v1193
      %v1206 = vadd.f32 %v1158, %v1194
      %1213 = vrot.lane.b32.xlu0 %v1201, 32
      %v1214 = vpop.permute.xlu0 %1213
      %1215 = vrot.lane.b32.xlu0 %v1202, 32
      %v1216 = vpop.permute.xlu0 %1215
      %1217 = vrot.lane.b32.xlu0 %v1203, 32
      %v1218 = vpop.permute.xlu0 %1217
      %1219 = vrot.lane.b32.xlu0 %v1204, 32
      %v1220 = vpop.permute.xlu0 %1219
      %1221 = vrot.lane.b32.xlu0 %v1205, 32
      %v1222 = vpop.permute.xlu0 %1221
      %1223 = vrot.lane.b32.xlu0 %v1206, 32
      %v1224 = vpop.permute.xlu0 %1223
      %vm1225 = vcmask 261120
      %v1226 = vsel %vm1225, %v1214, %v1216
      %v1227 = vsel %vm1225, %v1216, %v1218
      %v1228 = vsel %vm1225, %v1220, %v1222
      %v1229 = vsel %vm1225, %v1222, %v1224
      %v1234 = vadd.f32 %v1001, %v1226
      %v1235 = vadd.f32 %v1002, %v1227
      %v1236 = vadd.f32 %v1003, %v1228
      %v1237 = vadd.f32 %v1004, %v1229
      %1238 = vset.pattern.permute.xlu0 3
      %1239 = vperm.xlu0 %1238, %v481
      %v1240 = vpop.permute.xlu0 %1239
      %1242 = vset.pattern.permute.xlu0 3
      %1243 = vperm.xlu0 %1242, %v482
      %v1244 = vpop.permute.xlu0 %1243
      %v1246 = vmul.f32 %v475, %v1240
      %v1247 = vmul.f32 %v476, %v1240
      %v1248 = vmul.f32 %v477, %v1240
      %v1249 = vmul.f32 %v478, %v1244
      %v1250 = vmul.f32 %v479, %v1244
      %v1251 = vmul.f32 %v480, %v1244
      %v1252 = vadd.f32 %v1246, 0.0
      %v1253 = vadd.f32 %v1247, 0.0
      %v1254 = vadd.f32 %v1248, 0.0
      %v1255 = vadd.f32 %v1249, 0.0
      %v1256 = vadd.f32 %v1250, 0.0
      %v1257 = vadd.f32 %v1251, 0.0
      %1258 = vset.pattern.permute.xlu0 8
      %1259 = vperm.xlu0 %1258, %v481
      %v1260 = vpop.permute.xlu0 %1259
      %1262 = vset.pattern.permute.xlu0 8
      %1263 = vperm.xlu0 %1262, %v482
      %v1264 = vpop.permute.xlu0 %1263
      %v1266 = vmul.f32 %v475, %v1260
      %v1267 = vmul.f32 %v476, %v1260
      %v1268 = vmul.f32 %v477, %v1260
      %v1269 = vmul.f32 %v478, %v1264
      %v1270 = vmul.f32 %v479, %v1264
      %v1271 = vmul.f32 %v480, %v1264
      %1278 = vrot.lane.b32.xlu0 %v1266, 112
      %v1279 = vpop.permute.xlu0 %1278
      %1280 = vrot.lane.b32.xlu0 %v1267, 112
      %v1281 = vpop.permute.xlu0 %1280
      %1282 = vrot.lane.b32.xlu0 %v1268, 112
      %v1283 = vpop.permute.xlu0 %1282
      %1284 = vrot.lane.b32.xlu0 %v1269, 112
      %v1285 = vpop.permute.xlu0 %1284
      %1286 = vrot.lane.b32.xlu0 %v1270, 112
      %v1287 = vpop.permute.xlu0 %1286
      %1288 = vrot.lane.b32.xlu0 %v1271, 112
      %v1289 = vpop.permute.xlu0 %1288
      %v1290 = vsel %vm537, %v1279, %v1281
      %v1291 = vsel %vm537, %v1281, %v1283
      %v1292 = vsel %vm537, %v1285, %v1287
      %v1293 = vsel %vm537, %v1287, %v1289
      %v1300 = vadd.f32 %v1252, %v1290
      %v1301 = vadd.f32 %v1253, %v1291
      %v1302 = vadd.f32 %v1254, %v1283
      %v1303 = vadd.f32 %v1255, %v1292
      %v1304 = vadd.f32 %v1256, %v1293
      %v1305 = vadd.f32 %v1257, %v1289
      %1306 = vset.pattern.permute.xlu0 13
      %1307 = vperm.xlu0 %1306, %v481
      %v1308 = vpop.permute.xlu0 %1307
      %1310 = vset.pattern.permute.xlu0 13
      %1311 = vperm.xlu0 %1310, %v482
      %v1312 = vpop.permute.xlu0 %1311
      %v1314 = vmul.f32 %v603, %v1308
      %v1315 = vmul.f32 %v604, %v1308
      %v1316 = vmul.f32 %v605, %v1308
      %v1317 = vmul.f32 %v606, %v1312
      %v1318 = vmul.f32 %v607, %v1312
      %v1319 = vmul.f32 %v608, %v1312
      %1326 = vrot.lane.b32.xlu0 %v1314, 96
      %v1327 = vpop.permute.xlu0 %1326
      %1328 = vrot.lane.b32.xlu0 %v1315, 96
      %v1329 = vpop.permute.xlu0 %1328
      %1330 = vrot.lane.b32.xlu0 %v1316, 96
      %v1331 = vpop.permute.xlu0 %1330
      %1332 = vrot.lane.b32.xlu0 %v1317, 96
      %v1333 = vpop.permute.xlu0 %1332
      %1334 = vrot.lane.b32.xlu0 %v1318, 96
      %v1335 = vpop.permute.xlu0 %1334
      %1336 = vrot.lane.b32.xlu0 %v1319, 96
      %v1337 = vpop.permute.xlu0 %1336
      %v1338 = vsel %vm586, %v1327, %v1329
      %v1339 = vsel %vm586, %v1329, %v1331
      %v1340 = vsel %vm586, %v1333, %v1335
      %v1341 = vsel %vm586, %v1335, %v1337
      %v1348 = vadd.f32 %v1300, %v1327
      %v1349 = vadd.f32 %v1301, %v1338
      %v1350 = vadd.f32 %v1302, %v1339
      %v1351 = vadd.f32 %v1303, %v1333
      %v1352 = vadd.f32 %v1304, %v1340
      %v1353 = vadd.f32 %v1305, %v1341
      %1354 = vset.pattern.permute.xlu0 18
      %1355 = vperm.xlu0 %1354, %v481
      %v1356 = vpop.permute.xlu0 %1355
      %1358 = vset.pattern.permute.xlu0 18
      %1359 = vperm.xlu0 %1358, %v482
      %v1360 = vpop.permute.xlu0 %1359
      %v1362 = vmul.f32 %v603, %v1356
      %v1363 = vmul.f32 %v604, %v1356
      %v1364 = vmul.f32 %v605, %v1356
      %v1365 = vmul.f32 %v606, %v1360
      %v1366 = vmul.f32 %v607, %v1360
      %v1367 = vmul.f32 %v608, %v1360
      %1374 = vrot.lane.b32.xlu0 %v1362, 80
      %v1375 = vpop.permute.xlu0 %1374
      %1376 = vrot.lane.b32.xlu0 %v1363, 80
      %v1377 = vpop.permute.xlu0 %1376
      %1378 = vrot.lane.b32.xlu0 %v1364, 80
      %v1379 = vpop.permute.xlu0 %1378
      %1380 = vrot.lane.b32.xlu0 %v1365, 80
      %v1381 = vpop.permute.xlu0 %1380
      %1382 = vrot.lane.b32.xlu0 %v1366, 80
      %v1383 = vpop.permute.xlu0 %1382
      %1384 = vrot.lane.b32.xlu0 %v1367, 80
      %v1385 = vpop.permute.xlu0 %1384
      %v1386 = vsel %vm641, %v1375, %v1377
      %v1387 = vsel %vm641, %v1377, %v1379
      %v1388 = vsel %vm641, %v1381, %v1383
      %v1389 = vsel %vm641, %v1383, %v1385
      %v1396 = vadd.f32 %v1348, %v1375
      %v1397 = vadd.f32 %v1349, %v1386
      %v1398 = vadd.f32 %v1350, %v1387
      %v1399 = vadd.f32 %v1351, %v1381
      %v1400 = vadd.f32 %v1352, %v1388
      %v1401 = vadd.f32 %v1353, %v1389
      %1402 = vset.pattern.permute.xlu0 23
      %1403 = vperm.xlu0 %1402, %v481
      %v1404 = vpop.permute.xlu0 %1403
      %1406 = vset.pattern.permute.xlu0 23
      %1407 = vperm.xlu0 %1406, %v482
      %v1408 = vpop.permute.xlu0 %1407
      %v1410 = vmul.f32 %v603, %v1404
      %v1411 = vmul.f32 %v604, %v1404
      %v1412 = vmul.f32 %v605, %v1404
      %v1413 = vmul.f32 %v606, %v1408
      %v1414 = vmul.f32 %v607, %v1408
      %v1415 = vmul.f32 %v608, %v1408
      %1422 = vrot.lane.b32.xlu0 %v1410, 64
      %v1423 = vpop.permute.xlu0 %1422
      %1424 = vrot.lane.b32.xlu0 %v1411, 64
      %v1425 = vpop.permute.xlu0 %1424
      %1426 = vrot.lane.b32.xlu0 %v1412, 64
      %v1427 = vpop.permute.xlu0 %1426
      %1428 = vrot.lane.b32.xlu0 %v1413, 64
      %v1429 = vpop.permute.xlu0 %1428
      %1430 = vrot.lane.b32.xlu0 %v1414, 64
      %v1431 = vpop.permute.xlu0 %1430
      %1432 = vrot.lane.b32.xlu0 %v1415, 64
      %v1433 = vpop.permute.xlu0 %1432
      %v1434 = vsel %vm690, %v1423, %v1425
      %v1435 = vsel %vm690, %v1425, %v1427
      %v1436 = vsel %vm690, %v1429, %v1431
      %v1437 = vsel %vm690, %v1431, %v1433
      %v1444 = vadd.f32 %v1396, %v1423
      %v1445 = vadd.f32 %v1397, %v1434
      %v1446 = vadd.f32 %v1398, %v1435
      %v1447 = vadd.f32 %v1399, %v1429
      %v1448 = vadd.f32 %v1400, %v1436
      %v1449 = vadd.f32 %v1401, %v1437
      %v1450 = vadd.s32 %v473, 1
      %v1451 = vadd.s32 %v474, 1
      %vm1452 = vcmp.ge.s32.totalorder %v1450, 0
      %vm1453 = vcmp.ge.s32.totalorder %v1451, 0
      %vm1454 = vcmp.lt.s32.totalorder %v1450, 16
      %vm1455 = vcmp.lt.s32.totalorder %v1451, 16
      %vm1456 = vmand %vm1452, %vm1454
      %vm1457 = vmand %vm1453, %vm1455
      %1464 = vrot.lane.b32.xlu0 %v1444, 31
      %v1465 = vpop.permute.xlu0 %1464
      %1466 = vrot.lane.b32.xlu0 %v1445, 31
      %v1467 = vpop.permute.xlu0 %1466
      %1468 = vrot.lane.b32.xlu0 %v1446, 31
      %v1469 = vpop.permute.xlu0 %1468
      %1470 = vrot.lane.b32.xlu0 %v1447, 31
      %v1471 = vpop.permute.xlu0 %1470
      %1472 = vrot.lane.b32.xlu0 %v1448, 31
      %v1473 = vpop.permute.xlu0 %1472
      %1474 = vrot.lane.b32.xlu0 %v1449, 31
      %v1475 = vpop.permute.xlu0 %1474
      %vm1476 = vcmask 252928
      %v1477 = vsel %vm1476, %v1465, %v1467
      %v1478 = vsel %vm1476, %v1467, %v1469
      %v1479 = vsel %vm1476, %v1471, %v1473
      %v1480 = vsel %vm1476, %v1473, %v1475
      %v1485 = vsel %vm1456, %v1477, 0.0
      %v1486 = vsel %vm1457, %v1478, 0.0
      %v1487 = vsel %vm1456, %v1479, 0.0
      %v1488 = vsel %vm1457, %v1480, 0.0
      %v1489 = vadd.f32 %v1234, %v1485
      %v1490 = vadd.f32 %v1235, %v1486
      %v1491 = vadd.f32 %v1236, %v1487
      %v1492 = vadd.f32 %v1237, %v1488
      %1493 = vset.pattern.permute.xlu0 4
      %1494 = vperm.xlu0 %1493, %v481
      %v1495 = vpop.permute.xlu0 %1494
      %1497 = vset.pattern.permute.xlu0 4
      %1498 = vperm.xlu0 %1497, %v482
      %v1499 = vpop.permute.xlu0 %1498
      %v1501 = vmul.f32 %v475, %v1495
      %v1502 = vmul.f32 %v476, %v1495
      %v1503 = vmul.f32 %v477, %v1495
      %v1504 = vmul.f32 %v478, %v1499
      %v1505 = vmul.f32 %v479, %v1499
      %v1506 = vmul.f32 %v480, %v1499
      %v1507 = vadd.f32 %v1501, 0.0
      %v1508 = vadd.f32 %v1502, 0.0
      %v1509 = vadd.f32 %v1503, 0.0
      %v1510 = vadd.f32 %v1504, 0.0
      %v1511 = vadd.f32 %v1505, 0.0
      %v1512 = vadd.f32 %v1506, 0.0
      %1513 = vset.pattern.permute.xlu0 9
      %1514 = vperm.xlu0 %1513, %v481
      %v1515 = vpop.permute.xlu0 %1514
      %1517 = vset.pattern.permute.xlu0 9
      %1518 = vperm.xlu0 %1517, %v482
      %v1519 = vpop.permute.xlu0 %1518
      %v1521 = vmul.f32 %v475, %v1515
      %v1522 = vmul.f32 %v476, %v1515
      %v1523 = vmul.f32 %v477, %v1515
      %v1524 = vmul.f32 %v478, %v1519
      %v1525 = vmul.f32 %v479, %v1519
      %v1526 = vmul.f32 %v480, %v1519
      %1533 = vrot.lane.b32.xlu0 %v1521, 112
      %v1534 = vpop.permute.xlu0 %1533
      %1535 = vrot.lane.b32.xlu0 %v1522, 112
      %v1536 = vpop.permute.xlu0 %1535
      %1537 = vrot.lane.b32.xlu0 %v1523, 112
      %v1538 = vpop.permute.xlu0 %1537
      %1539 = vrot.lane.b32.xlu0 %v1524, 112
      %v1540 = vpop.permute.xlu0 %1539
      %1541 = vrot.lane.b32.xlu0 %v1525, 112
      %v1542 = vpop.permute.xlu0 %1541
      %1543 = vrot.lane.b32.xlu0 %v1526, 112
      %v1544 = vpop.permute.xlu0 %1543
      %v1545 = vsel %vm537, %v1534, %v1536
      %v1546 = vsel %vm537, %v1536, %v1538
      %v1547 = vsel %vm537, %v1540, %v1542
      %v1548 = vsel %vm537, %v1542, %v1544
      %v1555 = vadd.f32 %v1507, %v1545
      %v1556 = vadd.f32 %v1508, %v1546
      %v1557 = vadd.f32 %v1509, %v1538
      %v1558 = vadd.f32 %v1510, %v1547
      %v1559 = vadd.f32 %v1511, %v1548
      %v1560 = vadd.f32 %v1512, %v1544
      %1561 = vset.pattern.permute.xlu0 14
      %1562 = vperm.xlu0 %1561, %v481
      %v1563 = vpop.permute.xlu0 %1562
      %1565 = vset.pattern.permute.xlu0 14
      %1566 = vperm.xlu0 %1565, %v482
      %v1567 = vpop.permute.xlu0 %1566
      %v1569 = vmul.f32 %v603, %v1563
      %v1570 = vmul.f32 %v604, %v1563
      %v1571 = vmul.f32 %v605, %v1563
      %v1572 = vmul.f32 %v606, %v1567
      %v1573 = vmul.f32 %v607, %v1567
      %v1574 = vmul.f32 %v608, %v1567
      %1581 = vrot.lane.b32.xlu0 %v1569, 96
      %v1582 = vpop.permute.xlu0 %1581
      %1583 = vrot.lane.b32.xlu0 %v1570, 96
      %v1584 = vpop.permute.xlu0 %1583
      %1585 = vrot.lane.b32.xlu0 %v1571, 96
      %v1586 = vpop.permute.xlu0 %1585
      %1587 = vrot.lane.b32.xlu0 %v1572, 96
      %v1588 = vpop.permute.xlu0 %1587
      %1589 = vrot.lane.b32.xlu0 %v1573, 96
      %v1590 = vpop.permute.xlu0 %1589
      %1591 = vrot.lane.b32.xlu0 %v1574, 96
      %v1592 = vpop.permute.xlu0 %1591
      %v1593 = vsel %vm586, %v1582, %v1584
      %v1594 = vsel %vm586, %v1584, %v1586
      %v1595 = vsel %vm586, %v1588, %v1590
      %v1596 = vsel %vm586, %v1590, %v1592
      %v1603 = vadd.f32 %v1555, %v1582
      %v1604 = vadd.f32 %v1556, %v1593
      %v1605 = vadd.f32 %v1557, %v1594
      %v1606 = vadd.f32 %v1558, %v1588
      %v1607 = vadd.f32 %v1559, %v1595
      %v1608 = vadd.f32 %v1560, %v1596
      %1609 = vset.pattern.permute.xlu0 19
      %1610 = vperm.xlu0 %1609, %v481
      %v1611 = vpop.permute.xlu0 %1610
      %1613 = vset.pattern.permute.xlu0 19
      %1614 = vperm.xlu0 %1613, %v482
      %v1615 = vpop.permute.xlu0 %1614
      %v1617 = vmul.f32 %v603, %v1611
      %v1618 = vmul.f32 %v604, %v1611
      %v1619 = vmul.f32 %v605, %v1611
      %v1620 = vmul.f32 %v606, %v1615
      %v1621 = vmul.f32 %v607, %v1615
      %v1622 = vmul.f32 %v608, %v1615
      %1629 = vrot.lane.b32.xlu0 %v1617, 80
      %v1630 = vpop.permute.xlu0 %1629
      %1631 = vrot.lane.b32.xlu0 %v1618, 80
      %v1632 = vpop.permute.xlu0 %1631
      %1633 = vrot.lane.b32.xlu0 %v1619, 80
      %v1634 = vpop.permute.xlu0 %1633
      %1635 = vrot.lane.b32.xlu0 %v1620, 80
      %v1636 = vpop.permute.xlu0 %1635
      %1637 = vrot.lane.b32.xlu0 %v1621, 80
      %v1638 = vpop.permute.xlu0 %1637
      %1639 = vrot.lane.b32.xlu0 %v1622, 80
      %v1640 = vpop.permute.xlu0 %1639
      %v1641 = vsel %vm641, %v1630, %v1632
      %v1642 = vsel %vm641, %v1632, %v1634
      %v1643 = vsel %vm641, %v1636, %v1638
      %v1644 = vsel %vm641, %v1638, %v1640
      %v1651 = vadd.f32 %v1603, %v1630
      %v1652 = vadd.f32 %v1604, %v1641
      %v1653 = vadd.f32 %v1605, %v1642
      %v1654 = vadd.f32 %v1606, %v1636
      %v1655 = vadd.f32 %v1607, %v1643
      %v1656 = vadd.f32 %v1608, %v1644
      %1657 = vset.pattern.permute.xlu0 24
      %1658 = vperm.xlu0 %1657, %v481
      %v1659 = vpop.permute.xlu0 %1658
      %1661 = vset.pattern.permute.xlu0 24
      %1662 = vperm.xlu0 %1661, %v482
      %v1663 = vpop.permute.xlu0 %1662
      %v1665 = vmul.f32 %v603, %v1659
      %v1666 = vmul.f32 %v604, %v1659
      %v1667 = vmul.f32 %v605, %v1659
      %v1668 = vmul.f32 %v606, %v1663
      %v1669 = vmul.f32 %v607, %v1663
      %v1670 = vmul.f32 %v608, %v1663
      %1677 = vrot.lane.b32.xlu0 %v1665, 64
      %v1678 = vpop.permute.xlu0 %1677
      %1679 = vrot.lane.b32.xlu0 %v1666, 64
      %v1680 = vpop.permute.xlu0 %1679
      %1681 = vrot.lane.b32.xlu0 %v1667, 64
      %v1682 = vpop.permute.xlu0 %1681
      %1683 = vrot.lane.b32.xlu0 %v1668, 64
      %v1684 = vpop.permute.xlu0 %1683
      %1685 = vrot.lane.b32.xlu0 %v1669, 64
      %v1686 = vpop.permute.xlu0 %1685
      %1687 = vrot.lane.b32.xlu0 %v1670, 64
      %v1688 = vpop.permute.xlu0 %1687
      %v1689 = vsel %vm690, %v1678, %v1680
      %v1690 = vsel %vm690, %v1680, %v1682
      %v1691 = vsel %vm690, %v1684, %v1686
      %v1692 = vsel %vm690, %v1686, %v1688
      %v1699 = vadd.f32 %v1651, %v1678
      %v1700 = vadd.f32 %v1652, %v1689
      %v1701 = vadd.f32 %v1653, %v1690
      %v1702 = vadd.f32 %v1654, %v1684
      %v1703 = vadd.f32 %v1655, %v1691
      %v1704 = vadd.f32 %v1656, %v1692
      %v1705 = vadd.s32 %v473, 2
      %v1706 = vadd.s32 %v474, 2
      %vm1707 = vcmp.ge.s32.totalorder %v1705, 0
      %vm1708 = vcmp.ge.s32.totalorder %v1706, 0
      %vm1709 = vcmp.lt.s32.totalorder %v1705, 16
      %vm1710 = vcmp.lt.s32.totalorder %v1706, 16
      %vm1711 = vmand %vm1707, %vm1709
      %vm1712 = vmand %vm1708, %vm1710
      %1719 = vrot.lane.b32.xlu0 %v1699, 30
      %v1720 = vpop.permute.xlu0 %1719
      %1721 = vrot.lane.b32.xlu0 %v1700, 30
      %v1722 = vpop.permute.xlu0 %1721
      %1723 = vrot.lane.b32.xlu0 %v1701, 30
      %v1724 = vpop.permute.xlu0 %1723
      %1725 = vrot.lane.b32.xlu0 %v1702, 30
      %v1726 = vpop.permute.xlu0 %1725
      %1727 = vrot.lane.b32.xlu0 %v1703, 30
      %v1728 = vpop.permute.xlu0 %1727
      %1729 = vrot.lane.b32.xlu0 %v1704, 30
      %v1730 = vpop.permute.xlu0 %1729
      %vm1731 = vcmask 244736
      %v1732 = vsel %vm1731, %v1720, %v1722
      %v1733 = vsel %vm1731, %v1722, %v1724
      %v1734 = vsel %vm1731, %v1726, %v1728
      %v1735 = vsel %vm1731, %v1728, %v1730
      %v1740 = vsel %vm1711, %v1732, 0.0
      %v1741 = vsel %vm1712, %v1733, 0.0
      %v1742 = vsel %vm1711, %v1734, 0.0
      %v1743 = vsel %vm1712, %v1735, 0.0
      %v1744 = vadd.f32 %v1489, %v1740
      %v1745 = vadd.f32 %v1490, %v1741
      %v1746 = vadd.f32 %v1491, %v1742
      %v1747 = vadd.f32 %v1492, %v1743
      %v1748 = vld [vmem:[%s4] sm:$0xff]
      %v1749 = vld [vmem:[%s4 + $0x8] sm:$0xff]
      %1751 = vset.pattern.permute.xlu0 0
      %1752 = vperm.xlu0 %1751, %v1748
      %v1753 = vpop.permute.xlu0 %1752
      %1756 = vset.pattern.permute.xlu0 0
      %1757 = vperm.xlu0 %1756, %v1749
      %v1758 = vpop.permute.xlu0 %1757
      %v1760 = vadd.f32 %v1744, %v1753
      %v1761 = vadd.f32 %v1745, %v1753
      %v1762 = vadd.f32 %v1746, %v1758
      %v1763 = vadd.f32 %v1747, %v1758
      %v1764 = vld [vmem:[%s5] sm:$0xff]
      %v1765 = vld [vmem:[%s5 + $0x8] sm:$0xff]
      %v1766 = vld [vmem:[%s5 + $0x10] sm:$0xff]
      %v1767 = vld [vmem:[%s5 + $0x18] sm:$0xff]
      %v1768 = vld [vmem:[%s6] sm:$0xff]
      %v1769 = vld [vmem:[%s6 + $0x8] sm:$0xff]
      %v1770 = vld [vmem:[%s6 + $0x10] sm:$0xff]
      %v1771 = vld [vmem:[%s6 + $0x18] sm:$0xff]
      %1773 = vset.pattern.permute.xlu0 0
      %1774 = vperm.xlu0 %1773, %v1768
      %v1775 = vpop.permute.xlu0 %1774
      %1778 = vset.pattern.permute.xlu0 0
      %1779 = vperm.xlu0 %1778, %v1769
      %v1780 = vpop.permute.xlu0 %1779
      %1783 = vset.pattern.permute.xlu0 0
      %1784 = vperm.xlu0 %1783, %v1770
      %v1785 = vpop.permute.xlu0 %1784
      %1788 = vset.pattern.permute.xlu0 0
      %1789 = vperm.xlu0 %1788, %v1771
      %v1790 = vpop.permute.xlu0 %1789
      %v1793 = vsel %vm332, %v1764, 0
      %v1796 = vsel %vm332, %v1765, 0
      %v1799 = vsel %vm332, %v1766, 0
      %v1802 = vsel %vm332, %v1767, 0
      %1804 = vmatprep.subr.mxu0 %v1761
      %1805 = vmatpush1.msra.mxu0 %v1760
      %1806 = vmatprep.subr.mxu0 %v1763
      %1807 = vmatpush1.msra.mxu0 %v1762
      %1808 = vmatprep.subr.mxu0 0.0
      %1809 = vmatpush1.msra.mxu0 0.0
      %1810 = vmatprep.subr.mxu0 0.0
      %1811 = vmatpush1.msra.mxu0 0.0
      %1812 = vmatprep.subr.mxu0 0.0
      %1813 = vmatpush1.msra.mxu0 0.0
      %1814 = vmatprep.subr.mxu0 0.0
      %1815 = vmatpush1.msra.mxu0 0.0
      %1816 = vmatprep.subr.mxu0 0.0
      %1817 = vmatpush1.msra.mxu0 0.0
      %1818 = vmatprep.subr.mxu0 0.0
      %1819 = vmatpush1.msra.mxu0 0.0
      %1820 = vmatprep.subr.mxu0 0.0
      %1821 = vmatpush1.msra.mxu0 0.0
      %1822 = vmatprep.subr.mxu0 0.0
      %1823 = vmatpush1.msra.mxu0 0.0
      %1824 = vmatprep.subr.mxu0 0.0
      %1825 = vmatpush1.msra.mxu0 0.0
      %1826 = vmatprep.subr.mxu0 0.0
      %1827 = vmatpush1.msra.mxu0 0.0
      %1828 = vmatprep.subr.mxu0 0.0
      %1829 = vmatpush1.msra.mxu0 0.0
      %1830 = vmatprep.subr.mxu0 0.0
      %1831 = vmatpush1.msra.mxu0 0.0
      %1832 = vmatprep.subr.mxu0 0.0
      %1833 = vmatpush1.msra.mxu0 0.0
      %1834 = vmatprep.subr.mxu0 0.0
      %1835 = vmatpush1.msra.mxu0 0.0
      %1836 = vmatprep.subr.mxu0 0.0
      %1837 = vmatpush1.msra.mxu0 0.0
      %1838 = vmatprep.subr.mxu0 0.0
      %1839 = vmatpush1.msra.mxu0 0.0
      %1840 = vmatprep.subr.mxu0 0.0
      %1841 = vmatpush1.msra.mxu0 0.0
      %1842 = vmatprep.subr.mxu0 0.0
      %1843 = vmatpush1.msra.mxu0 0.0
      %1844 = vmatprep.subr.mxu0 0.0
      %1845 = vmatpush1.msra.mxu0 0.0
      %1846 = vmatprep.subr.mxu0 0.0
      %1847 = vmatpush1.msra.mxu0 0.0
      %1848 = vmatprep.subr.mxu0 0.0
      %1849 = vmatpush1.msra.mxu0 0.0
      %1850 = vmatprep.subr.mxu0 0.0
      %1851 = vmatpush1.msra.mxu0 0.0
      %1852 = vmatprep.subr.mxu0 0.0
      %1853 = vmatpush1.msra.mxu0 0.0
      %1854 = vmatprep.subr.mxu0 0.0
      %1855 = vmatpush1.msra.mxu0 0.0
      %1856 = vmatprep.subr.mxu0 0.0
      %1857 = vmatpush1.msra.mxu0 0.0
      %1858 = vmatprep.subr.mxu0 0.0
      %1859 = vmatpush1.msra.mxu0 0.0
      %1860 = vmatprep.subr.mxu0 0.0
      %1861 = vmatpush1.msra.mxu0 0.0
      %1862 = vmatprep.subr.mxu0 0.0
      %1863 = vmatpush1.msra.mxu0 0.0
      %1864 = vmatprep.subr.mxu0 0.0
      %1865 = vmatpush1.msra.mxu0 0.0
      %1866 = vmatprep.subr.mxu0 0.0
      %1867 = vmatpush1.msra.mxu0 0.0
      %1868 = vmatprep.mubr.f32.mxu0 0.0
      %1869 = vmatmul.mubr.f32.gmra.mrb[0].mxu0 %v1793
      %v1870 = vpop.f32.mrb[0].mxu0
      %v1871 = vadd.f32 %v1775, %v1870
      %v1872 = vpop.f32.mrb[0].mxu0
      %v1873 = vadd.f32 %v1775, %v1872
      %1874 = vmatprep.mubr.f32.mxu0 0.0
      %1875 = vmatmul.mubr.f32.gmra.mrb[0].mxu0 %v1796
      %v1876 = vpop.f32.mrb[0].mxu0
      %v1877 = vadd.f32 %v1780, %v1876
      %v1878 = vpop.f32.mrb[0].mxu0
      %v1879 = vadd.f32 %v1780, %v1878
      %1880 = vmatprep.mubr.f32.mxu0 0.0
      %1881 = vmatmul.mubr.f32.gmra.mrb[0].mxu0 %v1799
      %v1882 = vpop.f32.mrb[0].mxu0
      %v1883 = vadd.f32 %v1785, %v1882
      %v1884 = vpop.f32.mrb[0].mxu0
      %v1885 = vadd.f32 %v1785, %v1884
      %1886 = vmatprep.mubr.f32.mxu0 0.0
      %1887 = vmatmul.mubr.f32.gmra.mrb[0].mxu0 %v1802
      %v1888 = vpop.f32.mrb[0].mxu0
      %v1889 = vadd.f32 %v1790, %v1888
      %v1890 = vpop.f32.mrb[0].mxu0
      %v1891 = vadd.f32 %v1790, %v1890
      %1892 = vdwg.mxu0
      %v1893 = vxor.u32 %v1871, 2147483648
      %v1894 = vxor.u32 %v1873, 2147483648
      %v1895 = vxor.u32 %v1877, 2147483648
      %v1896 = vxor.u32 %v1879, 2147483648
      %v1897 = vxor.u32 %v1883, 2147483648
      %v1898 = vxor.u32 %v1885, 2147483648
      %v1899 = vxor.u32 %v1889, 2147483648
      %v1900 = vxor.u32 %v1891, 2147483648
      %v1901 = vmul.f32 %v1893, 1.442695
      %v1902 = vpow.pop %v1901
      %v1903 = vmul.f32 %v1894, 1.442695
      %v1904 = vpow.pop %v1903
      %v1905 = vmul.f32 %v1895, 1.442695
      %v1906 = vpow.pop %v1905
      %v1907 = vmul.f32 %v1896, 1.442695
      %v1908 = vpow.pop %v1907
      %v1909 = vmul.f32 %v1897, 1.442695
      %v1910 = vpow.pop %v1909
      %v1911 = vmul.f32 %v1898, 1.442695
      %v1912 = vpow.pop %v1911
      %v1913 = vmul.f32 %v1899, 1.442695
      %v1914 = vpow.pop %v1913
      %v1915 = vmul.f32 %v1900, 1.442695
      %v1916 = vpow.pop %v1915
      %v1917 = vadd.f32 %v1902, 1.0
      %v1918 = vadd.f32 %v1904, 1.0
      %v1919 = vadd.f32 %v1906, 1.0
      %v1920 = vadd.f32 %v1908, 1.0
      %v1921 = vadd.f32 %v1910, 1.0
      %v1922 = vadd.f32 %v1912, 1.0
      %v1923 = vadd.f32 %v1914, 1.0
      %v1924 = vadd.f32 %v1916, 1.0
      %v1925 = vrcp.pop %v1917
      %v1926 = vmul.f32 1.0, %v1925
      %v1927 = vrcp.pop %v1918
      %v1928 = vmul.f32 1.0, %v1927
      %v1929 = vrcp.pop %v1919
      %v1930 = vmul.f32 1.0, %v1929
      %v1931 = vrcp.pop %v1920
      %v1932 = vmul.f32 1.0, %v1931
      %v1933 = vrcp.pop %v1921
      %v1934 = vmul.f32 1.0, %v1933
      %v1935 = vrcp.pop %v1922
      %v1936 = vmul.f32 1.0, %v1935
      %v1937 = vrcp.pop %v1923
      %v1938 = vmul.f32 1.0, %v1937
      %v1939 = vrcp.pop %v1924
      %v1940 = vmul.f32 1.0, %v1939
      %v1941 = vmul.f32 %v1871, %v1926
      %v1942 = vmul.f32 %v1873, %v1928
      %v1943 = vmul.f32 %v1877, %v1930
      %v1944 = vmul.f32 %v1879, %v1932
      %v1945 = vmul.f32 %v1883, %v1934
      %v1946 = vmul.f32 %v1885, %v1936
      %v1947 = vmul.f32 %v1889, %v1938
      %v1948 = vmul.f32 %v1891, %v1940
      %v1949 = vld [vmem:[%s7] sm:$0xff]
      %v1950 = vld [vmem:[%s7 + $0x8] sm:$0xff]
      %v1951 = vld [vmem:[%s7 + $0x10] sm:$0xff]
      %v1952 = vld [vmem:[%s7 + $0x18] sm:$0xff]
      %v1954 = vsel %vm332, %v1949, 0
      %v1957 = vsel %vm332, %v1950, 0
      %v1960 = vsel %vm332, %v1951, 0
      %v1963 = vsel %vm332, %v1952, 0
      %1965 = vmatprep.subr.mxu0 %v311
      %1966 = vmatpush1.msra.mxu0 %v310
      %1967 = vmatprep.subr.mxu0 %v313
      %1968 = vmatpush1.msra.mxu0 %v312
      %1969 = vmatprep.subr.mxu0 0.0
      %1970 = vmatpush1.msra.mxu0 0.0
      %1971 = vmatprep.subr.mxu0 0.0
      %1972 = vmatpush1.msra.mxu0 0.0
      %1973 = vmatprep.subr.mxu0 0.0
      %1974 = vmatpush1.msra.mxu0 0.0
      %1975 = vmatprep.subr.mxu0 0.0
      %1976 = vmatpush1.msra.mxu0 0.0
      %1977 = vmatprep.subr.mxu0 0.0
      %1978 = vmatpush1.msra.mxu0 0.0
      %1979 = vmatprep.subr.mxu0 0.0
      %1980 = vmatpush1.msra.mxu0 0.0
      %1981 = vmatprep.subr.mxu0 0.0
      %1982 = vmatpush1.msra.mxu0 0.0
      %1983 = vmatprep.subr.mxu0 0.0
      %1984 = vmatpush1.msra.mxu0 0.0
      %1985 = vmatprep.subr.mxu0 0.0
      %1986 = vmatpush1.msra.mxu0 0.0
      %1987 = vmatprep.subr.mxu0 0.0
      %1988 = vmatpush1.msra.mxu0 0.0
      %1989 = vmatprep.subr.mxu0 0.0
      %1990 = vmatpush1.msra.mxu0 0.0
      %1991 = vmatprep.subr.mxu0 0.0
      %1992 = vmatpush1.msra.mxu0 0.0
      %1993 = vmatprep.subr.mxu0 0.0
      %1994 = vmatpush1.msra.mxu0 0.0
      %1995 = vmatprep.subr.mxu0 0.0
      %1996 = vmatpush1.msra.mxu0 0.0
      %1997 = vmatprep.subr.mxu0 0.0
      %1998 = vmatpush1.msra.mxu0 0.0
      %1999 = vmatprep.subr.mxu0 0.0
      %2000 = vmatpush1.msra.mxu0 0.0
      %2001 = vmatprep.subr.mxu0 0.0
      %2002 = vmatpush1.msra.mxu0 0.0
      %2003 = vmatprep.subr.mxu0 0.0
      %2004 = vmatpush1.msra.mxu0 0.0
      %2005 = vmatprep.subr.mxu0 0.0
      %2006 = vmatpush1.msra.mxu0 0.0
      %2007 = vmatprep.subr.mxu0 0.0
      %2008 = vmatpush1.msra.mxu0 0.0
      %2009 = vmatprep.subr.mxu0 0.0
      %2010 = vmatpush1.msra.mxu0 0.0
      %2011 = vmatprep.subr.mxu0 0.0
      %2012 = vmatpush1.msra.mxu0 0.0
      %2013 = vmatprep.subr.mxu0 0.0
      %2014 = vmatpush1.msra.mxu0 0.0
      %2015 = vmatprep.subr.mxu0 0.0
      %2016 = vmatpush1.msra.mxu0 0.0
      %2017 = vmatprep.subr.mxu0 0.0
      %2018 = vmatpush1.msra.mxu0 0.0
      %2019 = vmatprep.subr.mxu0 0.0
      %2020 = vmatpush1.msra.mxu0 0.0
      %2021 = vmatprep.subr.mxu0 0.0
      %2022 = vmatpush1.msra.mxu0 0.0
      %2023 = vmatprep.subr.mxu0 0.0
      %2024 = vmatpush1.msra.mxu0 0.0
      %2025 = vmatprep.subr.mxu0 0.0
      %2026 = vmatpush1.msra.mxu0 0.0
      %2027 = vmatprep.subr.mxu0 0.0
      %2028 = vmatpush1.msra.mxu0 0.0
      %2029 = vmatprep.mubr.f32.mxu0 0.0
      %2030 = vmatmul.mubr.f32.gmra.mrb[0].mxu0 %v1954
      %v2031 = vpop.f32.mrb[0].mxu0
      %v2032 = vadd.f32 0.0, %v2031
      %v2033 = vpop.f32.mrb[0].mxu0
      %v2034 = vadd.f32 0.0, %v2033
      %2035 = vmatprep.mubr.f32.mxu0 0.0
      %2036 = vmatmul.mubr.f32.gmra.mrb[0].mxu0 %v1957
      %v2037 = vpop.f32.mrb[0].mxu0
      %v2038 = vadd.f32 0.0, %v2037
      %v2039 = vpop.f32.mrb[0].mxu0
      %v2040 = vadd.f32 0.0, %v2039
      %2041 = vmatprep.mubr.f32.mxu0 0.0
      %2042 = vmatmul.mubr.f32.gmra.mrb[0].mxu0 %v1960
      %v2043 = vpop.f32.mrb[0].mxu0
      %v2044 = vadd.f32 0.0, %v2043
      %v2045 = vpop.f32.mrb[0].mxu0
      %v2046 = vadd.f32 0.0, %v2045
      %2047 = vmatprep.mubr.f32.mxu0 0.0
      %2048 = vmatmul.mubr.f32.gmra.mrb[0].mxu0 %v1963
      %v2049 = vpop.f32.mrb[0].mxu0
      %v2050 = vadd.f32 0.0, %v2049
      %v2051 = vpop.f32.mrb[0].mxu0
      %v2052 = vadd.f32 0.0, %v2051
      %2053 = vdwg.mxu0
      %v2054 = vadd.f32 %v1941, %v2032
      %v2055 = vadd.f32 %v1942, %v2034
      %v2056 = vadd.f32 %v1943, %v2038
      %v2057 = vadd.f32 %v1944, %v2040
      %v2058 = vadd.f32 %v1945, %v2044
      %v2059 = vadd.f32 %v1946, %v2046
      %v2060 = vadd.f32 %v1947, %v2050
      %v2061 = vadd.f32 %v1948, %v2052
      %2062 = vst [vmem:[%s305] sm:$0xff] %v2054
      %2063 = vst [vmem:[%s305 + $0x8] sm:$0xff] %v2055
      %2064 = vst [vmem:[%s305 + $0x10] sm:$0xff] %v2056
      %2065 = vst [vmem:[%s305 + $0x18] sm:$0xff] %v2057
      %2066 = vst [vmem:[%s305 + $0x20] sm:$0xff] %v2058
      %2067 = vst [vmem:[%s305 + $0x28] sm:$0xff] %v2059
      %2068 = vst [vmem:[%s305 + $0x30] sm:$0xff] %v2060
      %2069 = vst [vmem:[%s305 + $0x38] sm:$0xff] %v2061
      %p2070 = scmp.lt.s32.totalorder %s19, 1
      %s2071 = scalar_select %p2070, %s19, 1
      %s2072 = smul.addr %s2071, 8
      %s2073 = smul.addr %s2072, 8
      %s2074 = scalar_lea.vmem %s8, %s2073
      // Predicated region
      $region53: #{shufflev2_block.1} parent=51 // pred_check
        %p2075 = pneg %p210
      $region54: #{shufflev2_block.1} parent=51 // pred_check_branch
        %2077 = sbr.rel (%p2075) target = $region56
      $region55: #{shufflev2_block.1} parent=51 // pred_region
        _
      $region56: #{shufflev2_block.1} parent=51 // pred_fallthru
        _
    $region52: #{shufflev2_block.1} parent=5 // pred_fallthru
      _
    %p2078 = scmp.le.s32.totalorder 2, %s14
    // Predicated region
    $region57: #{shufflev2_block.1} parent=5 // pred_check
      %p2079 = pneg %p2078
    $region58: #{shufflev2_block.1} parent=5 // pred_check_branch
      %2081 = sbr.rel (%p2079) target = $region60
    $region59: #{shufflev2_block.1} parent=5 // pred_region
      %s2082 = ssub.s32 %s14, 2
      // Predicated region
      $region61: #{shufflev2_block.1} parent=59 // pred_check
        %p2083 = pneg %p216
      $region62: #{shufflev2_block.1} parent=59 // pred_check_branch
        %2085 = sbr.rel (%p2083) target = $region64
      $region63: #{shufflev2_block.1} parent=59 // pred_region
        %p2086 = scmp.lt.s32.totalorder %s20, 1
        %s2087 = scalar_select %p2086, %s20, 1
        %s2088 = smul.addr %s2087, 8
        %s2089 = smul.addr %s2088, 8
        %s2090 = scalar_lea.vmem %s8, %s2089
      $region64: #{shufflev2_block.1} parent=59 // pred_fallthru
        _
    $region60: #{shufflev2_block.1} parent=5 // pred_fallthru
      _
  $region6: #{shufflev2_block.1} parent=0 // loop_footer
    %s18 = sadd.s32 1, %s14
  $region7: #{shufflev2_block.1} parent=0 // loop_footer_branch
    %13 = sbr.rel target = $region3
  $region8: #{shufflev2_block.1} parent=0 // loop_exit
    _

</llo_original>
